<compile_context>
chip_gen: v7x
topology: tpu7x:2x2x1
jax: 0.10.0
libtpu: 0.0.40
codegen_flags: <defaults>
</compile_context>

<pallas_src>
import math

import jax
import jax.numpy as jnp
from jax.experimental import pallas as pl
from jax.experimental.pallas import tpu as pltpu

IN_DIM = 22
HID_DIM = 20
HEAD_DIM = 4
NUM_HEADS = 5                      # fused order: mc, m12, m21, m1, m2
OUT_DIM = NUM_HEADS * HEAD_DIM     # 20
FOLD = 32                          # rows folded per lane-dense "fold-row"
DEFAULT_TB = 4096                  # batch tile in logical rows


def _round_up(x, m):
    return ((x + m - 1) // m) * m


def _cdiv(a, b):
    return -(-a // b)


# --------------------------------------------------------------------------
# Kernel
# --------------------------------------------------------------------------
def mlp_kernel(x_ref, w1_ref, b1_ref, wh_ref, bh_ref, out_ref):
    x = x_ref[...]
    if x.dtype != w1_ref.dtype:            # static (trace-time) branch
        x = x.astype(w1_ref.dtype)
    # fc1 (block-diagonal, lane-dense) + bias + ReLU, f32 accumulation
    h = jnp.dot(x, w1_ref[...], preferred_element_type=jnp.float32)
    h = jnp.maximum(h + b1_ref[...], 0.0)
    # Dropout is identity in eval/inference mode.
    # TODO(synk): training-mode dropout (p=0.5 with 1/(1-p) scaling) not implemented.
    # fused 5-head projection (block-diagonal, lane-dense) + bias
    p = jnp.dot(h.astype(wh_ref.dtype), wh_ref[...],
                preferred_element_type=jnp.float32)
    out_ref[...] = (p + bh_ref[...]).astype(out_ref.dtype)


# --------------------------------------------------------------------------
# Parameter packing (do once): block-diagonal replicated bf16 weights.
# --------------------------------------------------------------------------
def pack_params(w1, b1, wh, bh, *, fold=FOLD, weight_dtype=jnp.bfloat16):
    """w1:(22,20) b1:(1,20) wh:(20,20) bh:(1,20)  ->  folded, bf16 weights."""
    k = fold
    eye = jnp.eye(k, dtype=jnp.float32)
    w1_bd = jnp.kron(eye, w1.astype(jnp.float32)).astype(weight_dtype)  # (22k,20k)
    wh_bd = jnp.kron(eye, wh.astype(jnp.float32)).astype(weight_dtype)  # (20k,20k)
    b1_t = jnp.tile(b1.reshape(1, -1), (1, k)).astype(jnp.float32)      # (1,20k)
    bh_t = jnp.tile(bh.reshape(1, -1), (1, k)).astype(jnp.float32)      # (1,20k)
    return w1_bd, b1_t, wh_bd, bh_t


# --------------------------------------------------------------------------
# Forward wrappers
# --------------------------------------------------------------------------
def mlp_forward_fused(x, packed, *, tb=DEFAULT_TB, out_dtype=jnp.float32):
    """Returns the fused (B, 20) head output [mc|m12|m21|m1|m2].

    x: (B, 22); bf16 input halves the dominant HBM read (f32 also accepted).
    packed: output of pack_params().
    """
    w1_bd, b1_t, wh_bd, bh_t = packed
    k = w1_bd.shape[0] // IN_DIM
    B = x.shape[0]

    # ---- tiling plan (fold-row units) ------------------------------------
    F = _cdiv(B, k)                       # fold-rows needed
    tf_target = max(8, tb // k)           # fold-rows per grid step
    n_steps = max(1, _cdiv(F, tf_target))
    # v7x: give the "parallel" axis >= 2 steps so both TensorCores get work,
    # but only once the batch is big enough (>= 4096 rows at k=32) that the
    # extra 8-alignment padding is negligible; harmless on single-TC v5e/v6e.
    if F >= 128:
        n_steps = max(n_steps, 2)
    if n_steps == 1:
        tf = F                            # single block == full extent
    else:
        tf = _round_up(_cdiv(F, n_steps), 8)
        n_steps = _cdiv(F, tf)
    f_pad = n_steps * tf
    b_pad = f_pad * k

    if b_pad != B:
        x = jnp.pad(x, ((0, b_pad - B), (0, 0)))
    x_f = x.reshape(f_pad, k * IN_DIM)    # contiguous reshape: free

    out = pl.pallas_call(
        mlp_kernel,
        out_shape=jax.ShapeDtypeStruct((f_pad, k * OUT_DIM), out_dtype),
        grid=(n_steps,),
        in_specs=[
            pl.BlockSpec((tf, k * IN_DIM), lambda i: (i, 0)),       # x tile
            pl.BlockSpec(w1_bd.shape, lambda i: (0, 0)),            # resident
            pl.BlockSpec(b1_t.shape, lambda i: (0, 0)),             # resident
            pl.BlockSpec(wh_bd.shape, lambda i: (0, 0)),            # resident
            pl.BlockSpec(bh_t.shape, lambda i: (0, 0)),             # resident
        ],
        out_specs=pl.BlockSpec((tf, k * OUT_DIM), lambda i: (i, 0)),
        compiler_params=pltpu.CompilerParams(
            dimension_semantics=("parallel",)),
    )(x_f, w1_bd, b1_t, wh_bd, bh_t)

    out = out.reshape(b_pad, OUT_DIM)     # contiguous reshape: free
    if b_pad != B:
        out = out[:B]
    return out


def mlp_forward(x, packed, *, tb=DEFAULT_TB, out_dtype=jnp.float32):
    """Matches MLP.forward: returns (out_mc, out_m12, out_m21, out_m1, out_m2).

    NOTE: at a jit boundary each returned slice becomes its own HBM copy
    (roughly doubling the op's memory traffic). Prefer consuming
    mlp_forward_fused()'s (B, 20) array (or .reshape(B, 5, 4)) and slicing at
    the consumer inside the same jit.
    """
    out = mlp_forward_fused(x, packed, tb=tb, out_dtype=out_dtype)
    return tuple(out[:, h * HEAD_DIM:(h + 1) * HEAD_DIM] for h in range(NUM_HEADS))


# --------------------------------------------------------------------------
# Init (mimics PyTorch Linear default: uniform +/- 1/sqrt(fan_in))
# --------------------------------------------------------------------------
def init_params(key):
    ks = jax.random.split(key, 12)

    def linear(kw, kb, fan_in, fan_out):
        bound = 1.0 / math.sqrt(fan_in)
        w = jax.random.uniform(kw, (fan_in, fan_out), jnp.float32, -bound, bound)
        b = jax.random.uniform(kb, (1, fan_out), jnp.float32, -bound, bound)
        return w, b

    w1, b1 = linear(ks[0], ks[1], IN_DIM, HID_DIM)
    w_mc, b_mc = linear(ks[2], ks[3], HID_DIM, HEAD_DIM)
    w_m1, b_m1 = linear(ks[4], ks[5], HID_DIM, HEAD_DIM)
    w_m2, b_m2 = linear(ks[6], ks[7], HID_DIM, HEAD_DIM)
    w_m12, b_m12 = linear(ks[8], ks[9], HID_DIM, HEAD_DIM)
    w_m21, b_m21 = linear(ks[10], ks[11], HID_DIM, HEAD_DIM)

    # Fuse heads along the output axis in RETURN order: [mc | m12 | m21 | m1 | m2]
    wh = jnp.concatenate([w_mc, w_m12, w_m21, w_m1, w_m2], axis=1)
    bh = jnp.concatenate([b_mc, b_m12, b_m21, b_m1, b_m2], axis=1)
    return w1, b1, wh, bh


# --------------------------------------------------------------------------
# Self-test
# --------------------------------------------------------------------------
if __name__ == "__main__":
    key = jax.random.PRNGKey(0)
    k_params, k_x1, k_x2, k_x3 = jax.random.split(key, 4)

    w1, b1, wh, bh = init_params(k_params)
    packed = pack_params(w1, b1, wh, bh, fold=FOLD)

    def ref_fused(x_f32):
        # Mirrors the kernel's quantization (bf16 x / weights / hidden, f32 accum).
        xq = x_f32.astype(jnp.bfloat16).astype(jnp.float32)
        w1q = w1.astype(jnp.bfloat16).astype(jnp.float32)
        whq = wh.astype(jnp.bfloat16).astype(jnp.float32)
        h = jnp.maximum(xq @ w1q + b1, 0.0)
        h = h.astype(jnp.bfloat16).astype(jnp.float32)
        return h @ whq + bh

    def ref_f32(x_f32):
        h = jnp.maximum(x_f32 @ w1 + b1, 0.0)
        return h @ wh + bh

    def check(x_f32, *, tb=DEFAULT_TB, out_dtype=jnp.float32, tol=1e-3):
        x_bf16 = x_f32.astype(jnp.bfloat16)   # bf16 feed halves the HBM read
        got = mlp_forward_fused(x_bf16, packed, tb=tb, out_dtype=out_dtype)
        got = jax.block_until_ready(got)
        assert got.shape == (x_f32.shape[0], OUT_DIM)
        want = ref_fused(x_f32)
        gotf = got.astype(jnp.float32)
        assert jnp.allclose(gotf, want, atol=tol, rtol=tol), (
            "max abs err vs quantized ref:",
            float(jnp.max(jnp.abs(gotf - want))))
        # Informational: deviation from the full-f32 PyTorch-equivalent path
        # (bf16 quantization of x/weights/hidden -> ~1e-2 level differences).
        err_f32 = float(jnp.max(jnp.abs(gotf - ref_f32(x_f32))))
        return err_f32

    # Case 1: tiny batch -> single fold-row, single grid step.
    x1 = jax.random.normal(k_x1, (8, IN_DIM), dtype=jnp.float32)
    e1 = check(x1)

    # Case 2: non-multiple batch -> exercises row/fold padding; also checks the
    # module-signature 5-tuple wrapper.
    x2 = jax.random.normal(k_x2, (37, IN_DIM), dtype=jnp.float32)
    e2 = check(x2)
    heads = mlp_forward(x2.astype(jnp.bfloat16), packed)
    heads = jax.block_until_ready(heads)
    full = ref_fused(x2)
    for hi, got in enumerate(heads):
        assert got.shape == (37, HEAD_DIM)
        want = full[:, hi * HEAD_DIM:(hi + 1) * HEAD_DIM]
        assert jnp.allclose(got, want, atol=1e-3, rtol=1e-3)

    # Case 3: forced small tile -> multi-step "parallel" grid; bf16 output path.
    x3 = jax.random.normal(k_x3, (300, IN_DIM), dtype=jnp.float32)
    e3 = check(x3, tb=64, out_dtype=jnp.bfloat16, tol=3e-2)

    print("KERNEL_OK")
</pallas_src>

<mosaic_0001>
module attributes {stable_mosaic.version = 11 : i64} {
  func.func @mlp_kernel(%arg0: i32, %arg1: memref<1x704xbf16, #tpu.memory_space<vmem>>, %arg2: memref<704x640xbf16, #tpu.memory_space<vmem>>, %arg3: memref<1x640xf32, #tpu.memory_space<vmem>>, %arg4: memref<640x640xbf16, #tpu.memory_space<vmem>>, %arg5: memref<1x640xf32, #tpu.memory_space<vmem>>, %arg6: memref<1x640xf32, #tpu.memory_space<vmem>>) attributes {dimension_semantics = [#tpu.dimension_semantics<parallel>], iteration_bounds = array<i64: 1>, scalar_prefetch = 0 : i64, scratch_operands = 0 : i64, tpu.core_type = #tpu.core_type<tc>, window_params = [{transform_indices = @transform_0, window_bounds = array<i64: 1, 704>}, {pipeline_mode = #tpu.pipeline_mode<synchronous>, transform_indices = @transform_1, window_bounds = array<i64: 704, 640>}, {pipeline_mode = #tpu.pipeline_mode<synchronous>, transform_indices = @transform_2, window_bounds = array<i64: 1, 640>}, {pipeline_mode = #tpu.pipeline_mode<synchronous>, transform_indices = @transform_3, window_bounds = array<i64: 640, 640>}, {pipeline_mode = #tpu.pipeline_mode<synchronous>, transform_indices = @transform_4, window_bounds = array<i64: 1, 640>}, {transform_indices = @transform_5, window_bounds = array<i64: 1, 640>}]} {
    %c0 = arith.constant 0 : index
    %c0_0 = arith.constant 0 : index
    %0 = vector.load %arg1[%c0, %c0_0] : memref<1x704xbf16, #tpu.memory_space<vmem>>, vector<1x704xbf16>
    %c0_1 = arith.constant 0 : index
    %c0_2 = arith.constant 0 : index
    %1 = vector.load %arg2[%c0_1, %c0_2] : memref<704x640xbf16, #tpu.memory_space<vmem>>, vector<704x640xbf16>
    %cst = arith.constant dense<0.000000e+00> : vector<1x640xf32>
    %2 = tpu.matmul %0, %1, %cst {dimension_numbers = #tpu.dot_dimension_numbers<[1], [0], [0], [1], [0, 0, 1, 1], [], []>} : vector<1x704xbf16>, vector<704x640xbf16>, vector<1x640xf32> -> vector<1x640xf32>
    %c0_3 = arith.constant 0 : index
    %c0_4 = arith.constant 0 : index
    %3 = vector.load %arg3[%c0_3, %c0_4] : memref<1x640xf32, #tpu.memory_space<vmem>>, vector<1x640xf32>
    %4 = arith.addf %2, %3 : vector<1x640xf32>
    %cst_5 = arith.constant 0.000000e+00 : f32
    %5 = vector.broadcast %cst_5 : f32 to vector<1x640xf32>
    %6 = arith.maximumf %4, %5 : vector<1x640xf32>
    %7 = arith.truncf %6 : vector<1x640xf32> to vector<1x640xbf16>
    %c0_6 = arith.constant 0 : index
    %c0_7 = arith.constant 0 : index
    %8 = vector.load %arg4[%c0_6, %c0_7] : memref<640x640xbf16, #tpu.memory_space<vmem>>, vector<640x640xbf16>
    %cst_8 = arith.constant dense<0.000000e+00> : vector<1x640xf32>
    %9 = tpu.matmul %7, %8, %cst_8 {dimension_numbers = #tpu.dot_dimension_numbers<[1], [0], [0], [1], [0, 0, 1, 1], [], []>} : vector<1x640xbf16>, vector<640x640xbf16>, vector<1x640xf32> -> vector<1x640xf32>
    %c0_9 = arith.constant 0 : index
    %c0_10 = arith.constant 0 : index
    %10 = vector.load %arg5[%c0_9, %c0_10] : memref<1x640xf32, #tpu.memory_space<vmem>>, vector<1x640xf32>
    %11 = arith.addf %9, %10 : vector<1x640xf32>
    %c0_11 = arith.constant 0 : index
    %c0_12 = arith.constant 0 : index
    %12 = vector.load %arg6[%c0_11, %c0_12] : memref<1x640xf32, #tpu.memory_space<vmem>>, vector<1x640xf32>
    tpu.vector_store %arg6[%c0_11, %c0_12], %11 {strides = array<i32>} : memref<1x640xf32, #tpu.memory_space<vmem>>, vector<1x640xf32>,
    return
  }
  func.func @transform_0(%arg0: i32) -> (i32, i32) {
    %c0_i32 = arith.constant 0 : i32
    %c0_i32_0 = arith.constant 0 : i32
    return %arg0, %c0_i32 : i32, i32
  }
  func.func @transform_1(%arg0: i32) -> (i32, i32) {
    %c0_i32 = arith.constant 0 : i32
    %c0_i32_0 = arith.constant 0 : i32
    %c0_i32_1 = arith.constant 0 : i32
    return %c0_i32, %c0_i32_0 : i32, i32
  }
  func.func @transform_2(%arg0: i32) -> (i32, i32) {
    %c0_i32 = arith.constant 0 : i32
    %c0_i32_0 = arith.constant 0 : i32
    %c0_i32_1 = arith.constant 0 : i32
    return %c0_i32, %c0_i32_0 : i32, i32
  }
  func.func @transform_3(%arg0: i32) -> (i32, i32) {
    %c0_i32 = arith.constant 0 : i32
    %c0_i32_0 = arith.constant 0 : i32
    %c0_i32_1 = arith.constant 0 : i32
    return %c0_i32, %c0_i32_0 : i32, i32
  }
  func.func @transform_4(%arg0: i32) -> (i32, i32) {
    %c0_i32 = arith.constant 0 : i32
    %c0_i32_0 = arith.constant 0 : i32
    %c0_i32_1 = arith.constant 0 : i32
    return %c0_i32, %c0_i32_0 : i32, i32
  }
  func.func @transform_5(%arg0: i32) -> (i32, i32) {
    %c0_i32 = arith.constant 0 : i32
    %c0_i32_0 = arith.constant 0 : i32
    return %arg0, %c0_i32 : i32, i32
  }
}

</mosaic_0001>

<llo_original>
// kernel: tpu_custom_call.1
$region0: #{tpu_custom_call.1}
  #allocation0 [shape = 'u32[]', space=smem, size = 0x4, offset = 0x4, fixed_abs, tag = 'smem constant byte address 0x4 - core index']
  #allocation1 [shape = 'u32[144,128]{1,0:T(1,128)}', space=vmem, size = 0x12000, scoped, tag = 'internal scratch']
  %s0 = inlined_call_operand.hbm [shape: bf16[1,704], index: 0, kind: input, shape index: {}]
  %s1 = inlined_call_operand.hbm [shape: bf16[704,640], index: 1, kind: input, shape index: {}]
  %s2 = inlined_call_operand.vmem [shape: f32[1,640], index: 2, kind: input, shape index: {}]
  %s3 = inlined_call_operand.hbm [shape: bf16[640,640], index: 3, kind: input, shape index: {}]
  %s4 = inlined_call_operand.vmem [shape: f32[1,640], index: 4, kind: input, shape index: {}]
  %s5 = inlined_call_operand.hbm [shape: f32[1,640], index: 5, kind: output, shape index: {}]
  %s6 = sld [smem:[#allocation0]]
  $region42: #{tpu_custom_call.1} parent=0
    _
  %s8 = ssub.s32 1, %s6
  %s9 = scalar_select 0, %s8, %s6
  $region1: #{tpu_custom_call.1} parent=0
    #allocation2 [shape = 'u8[3072]{0}', space=vmem, size = 0xc00, scoped, tag = 'input window, operand 0, single buffered']
    #allocation3 [shape = 's32[1]{0}', space=sflag, size = 0x4, scoped, tag = 'scoped memory for tpu_custom_call.1']
    #allocation4 [shape = 's32[1]{0}', space=sflag, size = 0x4, scoped, tag = 'scoped memory for tpu_custom_call.1']
    #allocation5 [shape = 'u8[901120]{0}', space=vmem, size = 0xdc000, scoped, tag = 'input window, operand 1, single buffered']
    #allocation6 [shape = 's32[1]{0}', space=sflag, size = 0x4, scoped, tag = 'scoped memory for tpu_custom_call.1']
    #allocation7 [shape = 'u8[819200]{0}', space=vmem, size = 0xc8000, scoped, tag = 'input window, operand 3, single buffered']
    #allocation8 [shape = 'u8[2560]{0}', space=vmem, size = 0xc00, scoped, tag = 'output window, operand 0, single buffered']
    %10 = vsyncpa [#allocation3], 0
    %11 = vsyncpa [#allocation6], 0
    %12 = vsyncpa [#allocation4], 0
    // Predicated region
    $region2: #{tpu_custom_call.1} parent=1 // pred_check
      _
    $region3: #{tpu_custom_call.1} parent=1 // pred_check_branch
      %14 = sbr.rel (0) target = $region5
    $region4: #{tpu_custom_call.1} parent=1 // pred_region
      %s16 = ssub.s32 96, 96
      %17 = vsyncadd [#allocation3], %s16
      %s19 = sshll.u32 [#allocation2], 4
      %s20 = int_to_ptr.vmem [resolvable:$true] %s19
      %22 = dma.hbm_to_vmem [thread:$0]  %s0, 96, %s20, [#allocation3]
    $region5: #{tpu_custom_call.1} parent=1 // pred_fallthru
      _
    // Predicated region
    $region6: #{tpu_custom_call.1} parent=1 // pred_check
      _
    $region7: #{tpu_custom_call.1} parent=1 // pred_check_branch
      %24 = sbr.rel (0) target = $region9
    $region8: #{tpu_custom_call.1} parent=1 // pred_region
      %s26 = ssub.s32 28160, 28160
      %27 = vsyncadd [#allocation6], %s26
      %s28 = sshll.u32 [#allocation5], 4
      %s29 = int_to_ptr.vmem [resolvable:$true] %s28
      %34 = dma.hbm_to_vmem [thread:$0]  %s1, 28160, %s29, [#allocation6], 320, 320, 20
    $region9: #{tpu_custom_call.1} parent=1 // pred_fallthru
      _
    // Predicated region
    $region10: #{tpu_custom_call.1} parent=1 // pred_check
      _
    $region11: #{tpu_custom_call.1} parent=1 // pred_check_branch
      %36 = sbr.rel (0) target = $region13
    $region12: #{tpu_custom_call.1} parent=1 // pred_region
      _
    $region13: #{tpu_custom_call.1} parent=1 // pred_fallthru
      _
    // Predicated region
    $region14: #{tpu_custom_call.1} parent=1 // pred_check
      _
    $region15: #{tpu_custom_call.1} parent=1 // pred_check_branch
      %38 = sbr.rel (0) target = $region17
    $region16: #{tpu_custom_call.1} parent=1 // pred_region
      %s40 = ssub.s32 25600, 25600
      %41 = vsyncadd [#allocation6], %s40
      %s42 = sshll.u32 [#allocation7], 4
      %s43 = int_to_ptr.vmem [resolvable:$true] %s42
      %48 = dma.hbm_to_vmem [thread:$0]  %s3, 25600, %s43, [#allocation6], 320, 320, 20
    $region17: #{tpu_custom_call.1} parent=1 // pred_fallthru
      _
    // Predicated region
    $region18: #{tpu_custom_call.1} parent=1 // pred_check
      _
    $region19: #{tpu_custom_call.1} parent=1 // pred_check_branch
      %50 = sbr.rel (0) target = $region21
    $region20: #{tpu_custom_call.1} parent=1 // pred_region
      _
    $region21: #{tpu_custom_call.1} parent=1 // pred_fallthru
      _
    // Predicated region
    $region22: #{tpu_custom_call.1} parent=1 // pred_check
      _
    $region23: #{tpu_custom_call.1} parent=1 // pred_check_branch
      %52 = sbr.rel (0) target = $region25
    $region24: #{tpu_custom_call.1} parent=1 // pred_region
      %53 = dma.done [#allocation3], 96
    $region25: #{tpu_custom_call.1} parent=1 // pred_fallthru
      _
    // Predicated region
    $region26: #{tpu_custom_call.1} parent=1 // pred_check
      _
    $region27: #{tpu_custom_call.1} parent=1 // pred_check_branch
      %55 = sbr.rel (0) target = $region29
    $region28: #{tpu_custom_call.1} parent=1 // pred_region
      %56 = dma.done [#allocation6], 28160
    $region29: #{tpu_custom_call.1} parent=1 // pred_fallthru
      _
    // Predicated region
    $region30: #{tpu_custom_call.1} parent=1 // pred_check
      _
    $region31: #{tpu_custom_call.1} parent=1 // pred_check_branch
      %58 = sbr.rel (0) target = $region33
    $region32: #{tpu_custom_call.1} parent=1 // pred_region
      %59 = dma.done [#allocation6], 25600
    $region33: #{tpu_custom_call.1} parent=1 // pred_fallthru
      _
    %v61 = vld [vmem:[#allocation2] sm:$0x3f]
    %v62 = vld [vmem:[#allocation5] sm:$0xff]
    %v63 = vld [vmem:[#allocation5 + $0x8] sm:$0xff]
    %v64 = vld [vmem:[#allocation5 + $0x10] sm:$0xf]
    %v65 = vld [vmem:[#allocation5 + $0x14] sm:$0xff]
    %v66 = vld [vmem:[#allocation5 + $0x1c] sm:$0xff]
    %v67 = vld [vmem:[#allocation5 + $0x24] sm:$0xf]
    %v68 = vld [vmem:[#allocation5 + $0x28] sm:$0xff]
    %v69 = vld [vmem:[#allocation5 + $0x30] sm:$0xff]
    %v70 = vld [vmem:[#allocation5 + $0x38] sm:$0xf]
    %v71 = vld [vmem:[#allocation5 + $0x3c] sm:$0xff]
    %v72 = vld [vmem:[#allocation5 + $0x44] sm:$0xff]
    %v73 = vld [vmem:[#allocation5 + $0x4c] sm:$0xf]
    %v74 = vld [vmem:[#allocation5 + $0x50] sm:$0xff]
    %v75 = vld [vmem:[#allocation5 + $0x58] sm:$0xff]
    %v76 = vld [vmem:[#allocation5 + $0x60] sm:$0xf]
    %v77 = vld [vmem:[#allocation5 + $0x64] sm:$0xff]
    %v78 = vld [vmem:[#allocation5 + $0x6c] sm:$0xff]
    %v79 = vld [vmem:[#allocation5 + $0x74] sm:$0xf]
    %v80 = vld [vmem:[#allocation5 + $0x78] sm:$0xff]
    %v81 = vld [vmem:[#allocation5 + $0x80] sm:$0xff]
    %v82 = vld [vmem:[#allocation5 + $0x88] sm:$0xf]
    %v83 = vld [vmem:[#allocation5 + $0x8c] sm:$0xff]
    %v84 = vld [vmem:[#allocation5 + $0x94] sm:$0xff]
    %v85 = vld [vmem:[#allocation5 + $0x9c] sm:$0xf]
    %v86 = vld [vmem:[#allocation5 + $0xa0] sm:$0xff]
    %v87 = vld [vmem:[#allocation5 + $0xa8] sm:$0xff]
    %v88 = vld [vmem:[#allocation5 + $0xb0] sm:$0xf]
    %v89 = vld [vmem:[#allocation5 + $0xb4] sm:$0xff]
    %v90 = vld [vmem:[#allocation5 + $0xbc] sm:$0xff]
    %v91 = vld [vmem:[#allocation5 + $0xc4] sm:$0xf]
    %v92 = vld [vmem:[#allocation5 + $0xc8] sm:$0xff]
    %v93 = vld [vmem:[#allocation5 + $0xd0] sm:$0xff]
    %v94 = vld [vmem:[#allocation5 + $0xd8] sm:$0xf]
    %v95 = vld [vmem:[#allocation5 + $0xdc] sm:$0xff]
    %v96 = vld [vmem:[#allocation5 + $0xe4] sm:$0xff]
    %v97 = vld [vmem:[#allocation5 + $0xec] sm:$0xf]
    %v98 = vld [vmem:[#allocation5 + $0xf0] sm:$0xff]
    %v99 = vld [vmem:[#allocation5 + $0xf8] sm:$0xff]
    %v100 = vld [vmem:[#allocation5 + $0x100] sm:$0xf]
    %v101 = vld [vmem:[#allocation5 + $0x104] sm:$0xff]
    %v102 = vld [vmem:[#allocation5 + $0x10c] sm:$0xff]
    %v103 = vld [vmem:[#allocation5 + $0x114] sm:$0xf]
    %v104 = vld [vmem:[#allocation5 + $0x118] sm:$0xff]
    %v105 = vld [vmem:[#allocation5 + $0x120] sm:$0xff]
    %v106 = vld [vmem:[#allocation5 + $0x128] sm:$0xf]
    %v107 = vld [vmem:[#allocation5 + $0x12c] sm:$0xff]
    %v108 = vld [vmem:[#allocation5 + $0x134] sm:$0xff]
    %v109 = vld [vmem:[#allocation5 + $0x13c] sm:$0xf]
    %v110 = vld [vmem:[#allocation5 + $0x140] sm:$0xff]
    %v111 = vld [vmem:[#allocation5 + $0x148] sm:$0xff]
    %v112 = vld [vmem:[#allocation5 + $0x150] sm:$0xf]
    %v113 = vld [vmem:[#allocation5 + $0x154] sm:$0xff]
    %v114 = vld [vmem:[#allocation5 + $0x15c] sm:$0xff]
    %v115 = vld [vmem:[#allocation5 + $0x164] sm:$0xf]
    %v116 = vld [vmem:[#allocation5 + $0x168] sm:$0xff]
    %v117 = vld [vmem:[#allocation5 + $0x170] sm:$0xff]
    %v118 = vld [vmem:[#allocation5 + $0x178] sm:$0xf]
    %v119 = vld [vmem:[#allocation5 + $0x17c] sm:$0xff]
    %v120 = vld [vmem:[#allocation5 + $0x184] sm:$0xff]
    %v121 = vld [vmem:[#allocation5 + $0x18c] sm:$0xf]
    %v122 = vld [vmem:[#allocation5 + $0x190] sm:$0xff]
    %v123 = vld [vmem:[#allocation5 + $0x198] sm:$0xff]
    %v124 = vld [vmem:[#allocation5 + $0x1a0] sm:$0xf]
    %v125 = vld [vmem:[#allocation5 + $0x1a4] sm:$0xff]
    %v126 = vld [vmem:[#allocation5 + $0x1ac] sm:$0xff]
    %v127 = vld [vmem:[#allocation5 + $0x1b4] sm:$0xf]
    %v128 = vld [vmem:[#allocation5 + $0x1b8] sm:$0xff]
    %v129 = vld [vmem:[#allocation5 + $0x1c0] sm:$0xff]
    %v130 = vld [vmem:[#allocation5 + $0x1c8] sm:$0xf]
    %v131 = vld [vmem:[#allocation5 + $0x1cc] sm:$0xff]
    %v132 = vld [vmem:[#allocation5 + $0x1d4] sm:$0xff]
    %v133 = vld [vmem:[#allocation5 + $0x1dc] sm:$0xf]
    %v134 = vld [vmem:[#allocation5 + $0x1e0] sm:$0xff]
    %v135 = vld [vmem:[#allocation5 + $0x1e8] sm:$0xff]
    %v136 = vld [vmem:[#allocation5 + $0x1f0] sm:$0xf]
    %v137 = vld [vmem:[#allocation5 + $0x1f4] sm:$0xff]
    %v138 = vld [vmem:[#allocation5 + $0x1fc] sm:$0xff]
    %v139 = vld [vmem:[#allocation5 + $0x204] sm:$0xf]
    %v140 = vld [vmem:[#allocation5 + $0x208] sm:$0xff]
    %v141 = vld [vmem:[#allocation5 + $0x210] sm:$0xff]
    %v142 = vld [vmem:[#allocation5 + $0x218] sm:$0xf]
    %v143 = vld [vmem:[#allocation5 + $0x21c] sm:$0xff]
    %v144 = vld [vmem:[#allocation5 + $0x224] sm:$0xff]
    %v145 = vld [vmem:[#allocation5 + $0x22c] sm:$0xf]
    %v146 = vld [vmem:[#allocation5 + $0x230] sm:$0xff]
    %v147 = vld [vmem:[#allocation5 + $0x238] sm:$0xff]
    %v148 = vld [vmem:[#allocation5 + $0x240] sm:$0xf]
    %v149 = vld [vmem:[#allocation5 + $0x244] sm:$0xff]
    %v150 = vld [vmem:[#allocation5 + $0x24c] sm:$0xff]
    %v151 = vld [vmem:[#allocation5 + $0x254] sm:$0xf]
    %v152 = vld [vmem:[#allocation5 + $0x258] sm:$0xff]
    %v153 = vld [vmem:[#allocation5 + $0x260] sm:$0xff]
    %v154 = vld [vmem:[#allocation5 + $0x268] sm:$0xf]
    %v155 = vld [vmem:[#allocation5 + $0x26c] sm:$0xff]
    %v156 = vld [vmem:[#allocation5 + $0x274] sm:$0xff]
    %v157 = vld [vmem:[#allocation5 + $0x27c] sm:$0xf]
    %v158 = vld [vmem:[#allocation5 + $0x280] sm:$0xff]
    %v159 = vld [vmem:[#allocation5 + $0x288] sm:$0xff]
    %v160 = vld [vmem:[#allocation5 + $0x290] sm:$0xf]
    %v161 = vld [vmem:[#allocation5 + $0x294] sm:$0xff]
    %v162 = vld [vmem:[#allocation5 + $0x29c] sm:$0xff]
    %v163 = vld [vmem:[#allocation5 + $0x2a4] sm:$0xf]
    %v164 = vld [vmem:[#allocation5 + $0x2a8] sm:$0xff]
    %v165 = vld [vmem:[#allocation5 + $0x2b0] sm:$0xff]
    %v166 = vld [vmem:[#allocation5 + $0x2b8] sm:$0xf]
    %v167 = vld [vmem:[#allocation5 + $0x2bc] sm:$0xff]
    %v168 = vld [vmem:[#allocation5 + $0x2c4] sm:$0xff]
    %v169 = vld [vmem:[#allocation5 + $0x2cc] sm:$0xf]
    %v170 = vld [vmem:[#allocation5 + $0x2d0] sm:$0xff]
    %v171 = vld [vmem:[#allocation5 + $0x2d8] sm:$0xff]
    %v172 = vld [vmem:[#allocation5 + $0x2e0] sm:$0xf]
    %v173 = vld [vmem:[#allocation5 + $0x2e4] sm:$0xff]
    %v174 = vld [vmem:[#allocation5 + $0x2ec] sm:$0xff]
    %v175 = vld [vmem:[#allocation5 + $0x2f4] sm:$0xf]
    %v176 = vld [vmem:[#allocation5 + $0x2f8] sm:$0xff]
    %v177 = vld [vmem:[#allocation5 + $0x300] sm:$0xff]
    %v178 = vld [vmem:[#allocation5 + $0x308] sm:$0xf]
    %v179 = vld [vmem:[#allocation5 + $0x30c] sm:$0xff]
    %v180 = vld [vmem:[#allocation5 + $0x314] sm:$0xff]
    %v181 = vld [vmem:[#allocation5 + $0x31c] sm:$0xf]
    %v182 = vld [vmem:[#allocation5 + $0x320] sm:$0xff]
    %v183 = vld [vmem:[#allocation5 + $0x328] sm:$0xff]
    %v184 = vld [vmem:[#allocation5 + $0x330] sm:$0xf]
    %v185 = vld [vmem:[#allocation5 + $0x334] sm:$0xff]
    %v186 = vld [vmem:[#allocation5 + $0x33c] sm:$0xff]
    %v187 = vld [vmem:[#allocation5 + $0x344] sm:$0xf]
    %v188 = vld [vmem:[#allocation5 + $0x348] sm:$0xff]
    %v189 = vld [vmem:[#allocation5 + $0x350] sm:$0xff]
    %v190 = vld [vmem:[#allocation5 + $0x358] sm:$0xf]
    %v191 = vld [vmem:[#allocation5 + $0x35c] sm:$0xff]
    %v192 = vld [vmem:[#allocation5 + $0x364] sm:$0xff]
    %v193 = vld [vmem:[#allocation5 + $0x36c] sm:$0xf]
    %v194 = vld [vmem:[#allocation5 + $0x370] sm:$0xff]
    %v195 = vld [vmem:[#allocation5 + $0x378] sm:$0xff]
    %v196 = vld [vmem:[#allocation5 + $0x380] sm:$0xf]
    %v197 = vld [vmem:[#allocation5 + $0x384] sm:$0xff]
    %v198 = vld [vmem:[#allocation5 + $0x38c] sm:$0xff]
    %v199 = vld [vmem:[#allocation5 + $0x394] sm:$0xf]
    %v200 = vld [vmem:[#allocation5 + $0x398] sm:$0xff]
    %v201 = vld [vmem:[#allocation5 + $0x3a0] sm:$0xff]
    %v202 = vld [vmem:[#allocation5 + $0x3a8] sm:$0xf]
    %v203 = vld [vmem:[#allocation5 + $0x3ac] sm:$0xff]
    %v204 = vld [vmem:[#allocation5 + $0x3b4] sm:$0xff]
    %v205 = vld [vmem:[#allocation5 + $0x3bc] sm:$0xf]
    %v206 = vld [vmem:[#allocation5 + $0x3c0] sm:$0xff]
    %v207 = vld [vmem:[#allocation5 + $0x3c8] sm:$0xff]
    %v208 = vld [vmem:[#allocation5 + $0x3d0] sm:$0xf]
    %v209 = vld [vmem:[#allocation5 + $0x3d4] sm:$0xff]
    %v210 = vld [vmem:[#allocation5 + $0x3dc] sm:$0xff]
    %v211 = vld [vmem:[#allocation5 + $0x3e4] sm:$0xf]
    %v212 = vld [vmem:[#allocation5 + $0x3e8] sm:$0xff]
    %v213 = vld [vmem:[#allocation5 + $0x3f0] sm:$0xff]
    %v214 = vld [vmem:[#allocation5 + $0x3f8] sm:$0xf]
    %v215 = vld [vmem:[#allocation5 + $0x3fc] sm:$0xff]
    %v216 = vld [vmem:[#allocation5 + $0x404] sm:$0xff]
    %v217 = vld [vmem:[#allocation5 + $0x40c] sm:$0xf]
    %v218 = vld [vmem:[#allocation5 + $0x410] sm:$0xff]
    %v219 = vld [vmem:[#allocation5 + $0x418] sm:$0xff]
    %v220 = vld [vmem:[#allocation5 + $0x420] sm:$0xf]
    %v221 = vld [vmem:[#allocation5 + $0x424] sm:$0xff]
    %v222 = vld [vmem:[#allocation5 + $0x42c] sm:$0xff]
    %v223 = vld [vmem:[#allocation5 + $0x434] sm:$0xf]
    %v224 = vld [vmem:[#allocation5 + $0x438] sm:$0xff]
    %v225 = vld [vmem:[#allocation5 + $0x440] sm:$0xff]
    %v226 = vld [vmem:[#allocation5 + $0x448] sm:$0xf]
    %v227 = vld [vmem:[#allocation5 + $0x44c] sm:$0xff]
    %v228 = vld [vmem:[#allocation5 + $0x454] sm:$0xff]
    %v229 = vld [vmem:[#allocation5 + $0x45c] sm:$0xf]
    %v230 = vld [vmem:[#allocation5 + $0x460] sm:$0xff]
    %v231 = vld [vmem:[#allocation5 + $0x468] sm:$0xff]
    %v232 = vld [vmem:[#allocation5 + $0x470] sm:$0xf]
    %v233 = vld [vmem:[#allocation5 + $0x474] sm:$0xff]
    %v234 = vld [vmem:[#allocation5 + $0x47c] sm:$0xff]
    %v235 = vld [vmem:[#allocation5 + $0x484] sm:$0xf]
    %v236 = vld [vmem:[#allocation5 + $0x488] sm:$0xff]
    %v237 = vld [vmem:[#allocation5 + $0x490] sm:$0xff]
    %v238 = vld [vmem:[#allocation5 + $0x498] sm:$0xf]
    %v239 = vld [vmem:[#allocation5 + $0x49c] sm:$0xff]
    %v240 = vld [vmem:[#allocation5 + $0x4a4] sm:$0xff]
    %v241 = vld [vmem:[#allocation5 + $0x4ac] sm:$0xf]
    %v242 = vld [vmem:[#allocation5 + $0x4b0] sm:$0xff]
    %v243 = vld [vmem:[#allocation5 + $0x4b8] sm:$0xff]
    %v244 = vld [vmem:[#allocation5 + $0x4c0] sm:$0xf]
    %v245 = vld [vmem:[#allocation5 + $0x4c4] sm:$0xff]
    %v246 = vld [vmem:[#allocation5 + $0x4cc] sm:$0xff]
    %v247 = vld [vmem:[#allocation5 + $0x4d4] sm:$0xf]
    %v248 = vld [vmem:[#allocation5 + $0x4d8] sm:$0xff]
    %v249 = vld [vmem:[#allocation5 + $0x4e0] sm:$0xff]
    %v250 = vld [vmem:[#allocation5 + $0x4e8] sm:$0xf]
    %v251 = vld [vmem:[#allocation5 + $0x4ec] sm:$0xff]
    %v252 = vld [vmem:[#allocation5 + $0x4f4] sm:$0xff]
    %v253 = vld [vmem:[#allocation5 + $0x4fc] sm:$0xf]
    %v254 = vld [vmem:[#allocation5 + $0x500] sm:$0xff]
    %v255 = vld [vmem:[#allocation5 + $0x508] sm:$0xff]
    %v256 = vld [vmem:[#allocation5 + $0x510] sm:$0xf]
    %v257 = vld [vmem:[#allocation5 + $0x514] sm:$0xff]
    %v258 = vld [vmem:[#allocation5 + $0x51c] sm:$0xff]
    %v259 = vld [vmem:[#allocation5 + $0x524] sm:$0xf]
    %v260 = vld [vmem:[#allocation5 + $0x528] sm:$0xff]
    %v261 = vld [vmem:[#allocation5 + $0x530] sm:$0xff]
    %v262 = vld [vmem:[#allocation5 + $0x538] sm:$0xf]
    %v263 = vld [vmem:[#allocation5 + $0x53c] sm:$0xff]
    %v264 = vld [vmem:[#allocation5 + $0x544] sm:$0xff]
    %v265 = vld [vmem:[#allocation5 + $0x54c] sm:$0xf]
    %v266 = vld [vmem:[#allocation5 + $0x550] sm:$0xff]
    %v267 = vld [vmem:[#allocation5 + $0x558] sm:$0xff]
    %v268 = vld [vmem:[#allocation5 + $0x560] sm:$0xf]
    %v269 = vld [vmem:[#allocation5 + $0x564] sm:$0xff]
    %v270 = vld [vmem:[#allocation5 + $0x56c] sm:$0xff]
    %v271 = vld [vmem:[#allocation5 + $0x574] sm:$0xf]
    %v272 = vld [vmem:[#allocation5 + $0x578] sm:$0xff]
    %v273 = vld [vmem:[#allocation5 + $0x580] sm:$0xff]
    %v274 = vld [vmem:[#allocation5 + $0x588] sm:$0xf]
    %v275 = vld [vmem:[#allocation5 + $0x58c] sm:$0xff]
    %v276 = vld [vmem:[#allocation5 + $0x594] sm:$0xff]
    %v277 = vld [vmem:[#allocation5 + $0x59c] sm:$0xf]
    %v278 = vld [vmem:[#allocation5 + $0x5a0] sm:$0xff]
    %v279 = vld [vmem:[#allocation5 + $0x5a8] sm:$0xff]
    %v280 = vld [vmem:[#allocation5 + $0x5b0] sm:$0xf]
    %v281 = vld [vmem:[#allocation5 + $0x5b4] sm:$0xff]
    %v282 = vld [vmem:[#allocation5 + $0x5bc] sm:$0xff]
    %v283 = vld [vmem:[#allocation5 + $0x5c4] sm:$0xf]
    %v284 = vld [vmem:[#allocation5 + $0x5c8] sm:$0xff]
    %v285 = vld [vmem:[#allocation5 + $0x5d0] sm:$0xff]
    %v286 = vld [vmem:[#allocation5 + $0x5d8] sm:$0xf]
    %v287 = vld [vmem:[#allocation5 + $0x5dc] sm:$0xff]
    %v288 = vld [vmem:[#allocation5 + $0x5e4] sm:$0xff]
    %v289 = vld [vmem:[#allocation5 + $0x5ec] sm:$0xf]
    %v290 = vld [vmem:[#allocation5 + $0x5f0] sm:$0xff]
    %v291 = vld [vmem:[#allocation5 + $0x5f8] sm:$0xff]
    %v292 = vld [vmem:[#allocation5 + $0x600] sm:$0xf]
    %v293 = vld [vmem:[#allocation5 + $0x604] sm:$0xff]
    %v294 = vld [vmem:[#allocation5 + $0x60c] sm:$0xff]
    %v295 = vld [vmem:[#allocation5 + $0x614] sm:$0xf]
    %v296 = vld [vmem:[#allocation5 + $0x618] sm:$0xff]
    %v297 = vld [vmem:[#allocation5 + $0x620] sm:$0xff]
    %v298 = vld [vmem:[#allocation5 + $0x628] sm:$0xf]
    %v299 = vld [vmem:[#allocation5 + $0x62c] sm:$0xff]
    %v300 = vld [vmem:[#allocation5 + $0x634] sm:$0xff]
    %v301 = vld [vmem:[#allocation5 + $0x63c] sm:$0xf]
    %v302 = vld [vmem:[#allocation5 + $0x640] sm:$0xff]
    %v303 = vld [vmem:[#allocation5 + $0x648] sm:$0xff]
    %v304 = vld [vmem:[#allocation5 + $0x650] sm:$0xf]
    %v305 = vld [vmem:[#allocation5 + $0x654] sm:$0xff]
    %v306 = vld [vmem:[#allocation5 + $0x65c] sm:$0xff]
    %v307 = vld [vmem:[#allocation5 + $0x664] sm:$0xf]
    %v308 = vld [vmem:[#allocation5 + $0x668] sm:$0xff]
    %v309 = vld [vmem:[#allocation5 + $0x670] sm:$0xff]
    %v310 = vld [vmem:[#allocation5 + $0x678] sm:$0xf]
    %v311 = vld [vmem:[#allocation5 + $0x67c] sm:$0xff]
    %v312 = vld [vmem:[#allocation5 + $0x684] sm:$0xff]
    %v313 = vld [vmem:[#allocation5 + $0x68c] sm:$0xf]
    %v314 = vld [vmem:[#allocation5 + $0x690] sm:$0xff]
    %v315 = vld [vmem:[#allocation5 + $0x698] sm:$0xff]
    %v316 = vld [vmem:[#allocation5 + $0x6a0] sm:$0xf]
    %v317 = vld [vmem:[#allocation5 + $0x6a4] sm:$0xff]
    %v318 = vld [vmem:[#allocation5 + $0x6ac] sm:$0xff]
    %v319 = vld [vmem:[#allocation5 + $0x6b4] sm:$0xf]
    %v320 = vld [vmem:[#allocation5 + $0x6b8] sm:$0xff]
    %v321 = vld [vmem:[#allocation5 + $0x6c0] sm:$0xff]
    %v322 = vld [vmem:[#allocation5 + $0x6c8] sm:$0xf]
    %v323 = vld [vmem:[#allocation5 + $0x6cc] sm:$0xff]
    %v324 = vld [vmem:[#allocation5 + $0x6d4] sm:$0xff]
    %v325 = vld [vmem:[#allocation5 + $0x6dc] sm:$0xf]
    %v326 = vld [vmem:[%s2] sm:$0x1f]
    %v328 = vcombine.high %v61, %v61
    %v330 = vunpack.c.l.s4 1966171168
    %v331 = vunpack.c.0.s8 %v330
    %v332 = vlaneseq
    %v333 = vshrl.u32 %v332, 7
    %v334 = vsub.s32 %v331, %v333
    %v335 = vrot.slane %v61, %v334
    %v337 = vunpack.c.l.s4 1966171168
    %v338 = vunpack.c.0.s8 %v337
    %v339 = vlaneseq
    %v340 = vshrl.u32 %v339, 7
    %v341 = vsub.s32 %v338, %v340
    %v342 = vrot.slane %v328, %v341
    %v343 = vcombine.high %v335, %v335
    %v344 = vcombine.high %v342, %v342
    %v346 = vunpack.c.l.s4 1966171168
    %v347 = vunpack.c.0.s8 %v346
    %v348 = vlaneseq
    %v349 = vshrl.u32 %v348, 7
    %v350 = vsub.s32 %v347, %v349
    %v351 = vrot.slane %v335, %v350
    %v353 = vunpack.c.l.s4 1966171168
    %v354 = vunpack.c.0.s8 %v353
    %v355 = vlaneseq
    %v356 = vshrl.u32 %v355, 7
    %v357 = vsub.s32 %v354, %v356
    %v358 = vrot.slane %v342, %v357
    %v360 = vunpack.c.l.s4 1966171168
    %v361 = vunpack.c.0.s8 %v360
    %v362 = vlaneseq
    %v363 = vshrl.u32 %v362, 7
    %v364 = vsub.s32 %v361, %v363
    %v365 = vrot.slane %v343, %v364
    %v367 = vunpack.c.l.s4 1966171168
    %v368 = vunpack.c.0.s8 %v367
    %v369 = vlaneseq
    %v370 = vshrl.u32 %v369, 7
    %v371 = vsub.s32 %v368, %v370
    %v372 = vrot.slane %v344, %v371
    %v373 = vcombine.high %v351, %v351
    %v374 = vcombine.high %v365, %v365
    %v644 = vunpack.c.l.b16 %v62
    %v645 = vunpack.c.h.b16 %v62
    %v646 = vunpack.c.l.b16 %v63
    %v647 = vunpack.c.h.b16 %v63
    %v648 = vunpack.c.l.b16 %v64
    %v649 = vunpack.c.l.b16 %v65
    %v650 = vunpack.c.h.b16 %v65
    %v651 = vunpack.c.l.b16 %v66
    %v652 = vunpack.c.h.b16 %v66
    %v653 = vunpack.c.l.b16 %v67
    %v654 = vunpack.c.l.b16 %v68
    %v655 = vunpack.c.h.b16 %v68
    %v656 = vunpack.c.l.b16 %v69
    %v657 = vunpack.c.h.b16 %v69
    %v658 = vunpack.c.l.b16 %v70
    %v659 = vunpack.c.l.b16 %v71
    %v660 = vunpack.c.h.b16 %v71
    %v661 = vunpack.c.l.b16 %v72
    %v662 = vunpack.c.h.b16 %v72
    %v663 = vunpack.c.l.b16 %v73
    %v664 = vunpack.c.l.b16 %v74
    %v665 = vunpack.c.h.b16 %v74
    %v666 = vunpack.c.l.b16 %v75
    %v667 = vunpack.c.h.b16 %v75
    %v668 = vunpack.c.l.b16 %v76
    %v669 = vunpack.c.l.b16 %v77
    %v670 = vunpack.c.h.b16 %v77
    %v671 = vunpack.c.l.b16 %v78
    %v672 = vunpack.c.h.b16 %v78
    %v673 = vunpack.c.l.b16 %v79
    %v674 = vunpack.c.l.b16 %v80
    %v675 = vunpack.c.h.b16 %v80
    %v676 = vunpack.c.l.b16 %v81
    %v677 = vunpack.c.h.b16 %v81
    %v678 = vunpack.c.l.b16 %v82
    %v679 = vunpack.c.l.b16 %v83
    %v680 = vunpack.c.h.b16 %v83
    %v681 = vunpack.c.l.b16 %v84
    %v682 = vunpack.c.h.b16 %v84
    %v683 = vunpack.c.l.b16 %v85
    %v684 = vunpack.c.l.b16 %v86
    %v685 = vunpack.c.h.b16 %v86
    %v686 = vunpack.c.l.b16 %v87
    %v687 = vunpack.c.h.b16 %v87
    %v688 = vunpack.c.l.b16 %v88
    %v689 = vunpack.c.l.b16 %v89
    %v690 = vunpack.c.h.b16 %v89
    %v691 = vunpack.c.l.b16 %v90
    %v692 = vunpack.c.h.b16 %v90
    %v693 = vunpack.c.l.b16 %v91
    %v694 = vunpack.c.l.b16 %v92
    %v695 = vunpack.c.h.b16 %v92
    %v696 = vunpack.c.l.b16 %v93
    %v697 = vunpack.c.h.b16 %v93
    %v698 = vunpack.c.l.b16 %v94
    %v699 = vunpack.c.l.b16 %v95
    %v700 = vunpack.c.h.b16 %v95
    %v701 = vunpack.c.l.b16 %v96
    %v702 = vunpack.c.h.b16 %v96
    %v703 = vunpack.c.l.b16 %v97
    %v704 = vunpack.c.l.b16 %v98
    %v705 = vunpack.c.h.b16 %v98
    %v706 = vunpack.c.l.b16 %v99
    %v707 = vunpack.c.h.b16 %v99
    %v708 = vunpack.c.l.b16 %v100
    %v709 = vunpack.c.l.b16 %v101
    %v710 = vunpack.c.h.b16 %v101
    %v711 = vunpack.c.l.b16 %v102
    %v712 = vunpack.c.h.b16 %v102
    %v713 = vunpack.c.l.b16 %v103
    %v714 = vunpack.c.l.b16 %v104
    %v715 = vunpack.c.h.b16 %v104
    %v716 = vunpack.c.l.b16 %v105
    %v717 = vunpack.c.h.b16 %v105
    %v718 = vunpack.c.l.b16 %v106
    %v719 = vunpack.c.l.b16 %v107
    %v720 = vunpack.c.h.b16 %v107
    %v721 = vunpack.c.l.b16 %v108
    %v722 = vunpack.c.h.b16 %v108
    %v723 = vunpack.c.l.b16 %v109
    %v724 = vunpack.c.l.b16 %v110
    %v725 = vunpack.c.h.b16 %v110
    %v726 = vunpack.c.l.b16 %v111
    %v727 = vunpack.c.h.b16 %v111
    %v728 = vunpack.c.l.b16 %v112
    %v729 = vunpack.c.l.b16 %v113
    %v730 = vunpack.c.h.b16 %v113
    %v731 = vunpack.c.l.b16 %v114
    %v732 = vunpack.c.h.b16 %v114
    %v733 = vunpack.c.l.b16 %v115
    %v734 = vunpack.c.l.b16 %v116
    %v735 = vunpack.c.h.b16 %v116
    %v736 = vunpack.c.l.b16 %v117
    %v737 = vunpack.c.h.b16 %v117
    %v738 = vunpack.c.l.b16 %v118
    %v739 = vunpack.c.l.b16 %v119
    %v740 = vunpack.c.h.b16 %v119
    %v741 = vunpack.c.l.b16 %v120
    %v742 = vunpack.c.h.b16 %v120
    %v743 = vunpack.c.l.b16 %v121
    %v744 = vunpack.c.l.b16 %v122
    %v745 = vunpack.c.h.b16 %v122
    %v746 = vunpack.c.l.b16 %v123
    %v747 = vunpack.c.h.b16 %v123
    %v748 = vunpack.c.l.b16 %v124
    %v749 = vunpack.c.l.b16 %v125
    %v750 = vunpack.c.h.b16 %v125
    %v751 = vunpack.c.l.b16 %v126
    %v752 = vunpack.c.h.b16 %v126
    %v753 = vunpack.c.l.b16 %v127
    %v754 = vunpack.c.l.b16 %v128
    %v755 = vunpack.c.h.b16 %v128
    %v756 = vunpack.c.l.b16 %v129
    %v757 = vunpack.c.h.b16 %v129
    %v758 = vunpack.c.l.b16 %v130
    %v759 = vunpack.c.l.b16 %v131
    %v760 = vunpack.c.h.b16 %v131
    %v761 = vunpack.c.l.b16 %v132
    %v762 = vunpack.c.h.b16 %v132
    %v763 = vunpack.c.l.b16 %v133
    %v764 = vunpack.c.l.b16 %v134
    %v765 = vunpack.c.h.b16 %v134
    %v766 = vunpack.c.l.b16 %v135
    %v767 = vunpack.c.h.b16 %v135
    %v768 = vunpack.c.l.b16 %v136
    %v769 = vunpack.c.l.b16 %v137
    %v770 = vunpack.c.h.b16 %v137
    %v771 = vunpack.c.l.b16 %v138
    %v772 = vunpack.c.h.b16 %v138
    %v773 = vunpack.c.l.b16 %v139
    %v774 = vunpack.c.l.b16 %v140
    %v775 = vunpack.c.h.b16 %v140
    %v776 = vunpack.c.l.b16 %v141
    %v777 = vunpack.c.h.b16 %v141
    %v778 = vunpack.c.l.b16 %v142
    %v779 = vunpack.c.l.b16 %v143
    %v780 = vunpack.c.h.b16 %v143
    %v781 = vunpack.c.l.b16 %v144
    %v782 = vunpack.c.h.b16 %v144
    %v783 = vunpack.c.l.b16 %v145
    %v784 = vunpack.c.l.b16 %v146
    %v785 = vunpack.c.h.b16 %v146
    %v786 = vunpack.c.l.b16 %v147
    %v787 = vunpack.c.h.b16 %v147
    %v788 = vunpack.c.l.b16 %v148
    %v789 = vunpack.c.l.b16 %v149
    %v790 = vunpack.c.h.b16 %v149
    %v791 = vunpack.c.l.b16 %v150
    %v792 = vunpack.c.h.b16 %v150
    %v793 = vunpack.c.l.b16 %v151
    %v794 = vunpack.c.l.b16 %v152
    %v795 = vunpack.c.h.b16 %v152
    %v796 = vunpack.c.l.b16 %v153
    %v797 = vunpack.c.h.b16 %v153
    %v798 = vunpack.c.l.b16 %v154
    %v799 = vunpack.c.l.b16 %v155
    %v800 = vunpack.c.h.b16 %v155
    %v801 = vunpack.c.l.b16 %v156
    %v802 = vunpack.c.h.b16 %v156
    %v803 = vunpack.c.l.b16 %v157
    %v804 = vunpack.c.l.b16 %v158
    %v805 = vunpack.c.h.b16 %v158
    %v806 = vunpack.c.l.b16 %v159
    %v807 = vunpack.c.h.b16 %v159
    %v808 = vunpack.c.l.b16 %v160
    %v809 = vunpack.c.l.b16 %v161
    %v810 = vunpack.c.h.b16 %v161
    %v811 = vunpack.c.l.b16 %v162
    %v812 = vunpack.c.h.b16 %v162
    %v813 = vunpack.c.l.b16 %v163
    %v814 = vunpack.c.l.b16 %v164
    %v815 = vunpack.c.h.b16 %v164
    %v816 = vunpack.c.l.b16 %v165
    %v817 = vunpack.c.h.b16 %v165
    %v818 = vunpack.c.l.b16 %v166
    %v819 = vunpack.c.l.b16 %v167
    %v820 = vunpack.c.h.b16 %v167
    %v821 = vunpack.c.l.b16 %v168
    %v822 = vunpack.c.h.b16 %v168
    %v823 = vunpack.c.l.b16 %v169
    %v824 = vunpack.c.l.b16 %v170
    %v825 = vunpack.c.h.b16 %v170
    %v826 = vunpack.c.l.b16 %v171
    %v827 = vunpack.c.h.b16 %v171
    %v828 = vunpack.c.l.b16 %v172
    %v829 = vunpack.c.l.b16 %v173
    %v830 = vunpack.c.h.b16 %v173
    %v831 = vunpack.c.l.b16 %v174
    %v832 = vunpack.c.h.b16 %v174
    %v833 = vunpack.c.l.b16 %v175
    %v834 = vunpack.c.l.b16 %v176
    %v835 = vunpack.c.h.b16 %v176
    %v836 = vunpack.c.l.b16 %v177
    %v837 = vunpack.c.h.b16 %v177
    %v838 = vunpack.c.l.b16 %v178
    %v839 = vunpack.c.l.b16 %v179
    %v840 = vunpack.c.h.b16 %v179
    %v841 = vunpack.c.l.b16 %v180
    %v842 = vunpack.c.h.b16 %v180
    %v843 = vunpack.c.l.b16 %v181
    %v844 = vunpack.c.l.b16 %v182
    %v845 = vunpack.c.h.b16 %v182
    %v846 = vunpack.c.l.b16 %v183
    %v847 = vunpack.c.h.b16 %v183
    %v848 = vunpack.c.l.b16 %v184
    %v849 = vunpack.c.l.b16 %v185
    %v850 = vunpack.c.h.b16 %v185
    %v851 = vunpack.c.l.b16 %v186
    %v852 = vunpack.c.h.b16 %v186
    %v853 = vunpack.c.l.b16 %v187
    %v854 = vunpack.c.l.b16 %v188
    %v855 = vunpack.c.h.b16 %v188
    %v856 = vunpack.c.l.b16 %v189
    %v857 = vunpack.c.h.b16 %v189
    %v858 = vunpack.c.l.b16 %v190
    %v859 = vunpack.c.l.b16 %v191
    %v860 = vunpack.c.h.b16 %v191
    %v861 = vunpack.c.l.b16 %v192
    %v862 = vunpack.c.h.b16 %v192
    %v863 = vunpack.c.l.b16 %v193
    %v864 = vunpack.c.l.b16 %v194
    %v865 = vunpack.c.h.b16 %v194
    %v866 = vunpack.c.l.b16 %v195
    %v867 = vunpack.c.h.b16 %v195
    %v868 = vunpack.c.l.b16 %v196
    %v869 = vunpack.c.l.b16 %v197
    %v870 = vunpack.c.h.b16 %v197
    %v871 = vunpack.c.l.b16 %v198
    %v872 = vunpack.c.h.b16 %v198
    %v873 = vunpack.c.l.b16 %v199
    %v874 = vunpack.c.l.b16 %v200
    %v875 = vunpack.c.h.b16 %v200
    %v876 = vunpack.c.l.b16 %v201
    %v877 = vunpack.c.h.b16 %v201
    %v878 = vunpack.c.l.b16 %v202
    %v879 = vunpack.c.l.b16 %v203
    %v880 = vunpack.c.h.b16 %v203
    %v881 = vunpack.c.l.b16 %v204
    %v882 = vunpack.c.h.b16 %v204
    %v883 = vunpack.c.l.b16 %v205
    %v884 = vunpack.c.l.b16 %v206
    %v885 = vunpack.c.h.b16 %v206
    %v886 = vunpack.c.l.b16 %v207
    %v887 = vunpack.c.h.b16 %v207
    %v888 = vunpack.c.l.b16 %v208
    %v889 = vunpack.c.l.b16 %v209
    %v890 = vunpack.c.h.b16 %v209
    %v891 = vunpack.c.l.b16 %v210
    %v892 = vunpack.c.h.b16 %v210
    %v893 = vunpack.c.l.b16 %v211
    %v894 = vunpack.c.l.b16 %v212
    %v895 = vunpack.c.h.b16 %v212
    %v896 = vunpack.c.l.b16 %v213
    %v897 = vunpack.c.h.b16 %v213
    %v898 = vunpack.c.l.b16 %v214
    %v899 = vunpack.c.l.b16 %v215
    %v900 = vunpack.c.h.b16 %v215
    %v901 = vunpack.c.l.b16 %v216
    %v902 = vunpack.c.h.b16 %v216
    %v903 = vunpack.c.l.b16 %v217
    %v904 = vunpack.c.l.b16 %v218
    %v905 = vunpack.c.h.b16 %v218
    %v906 = vunpack.c.l.b16 %v219
    %v907 = vunpack.c.h.b16 %v219
    %v908 = vunpack.c.l.b16 %v220
    %v909 = vunpack.c.l.b16 %v221
    %v910 = vunpack.c.h.b16 %v221
    %v911 = vunpack.c.l.b16 %v222
    %v912 = vunpack.c.h.b16 %v222
    %v913 = vunpack.c.l.b16 %v223
    %v914 = vunpack.c.l.b16 %v224
    %v915 = vunpack.c.h.b16 %v224
    %v916 = vunpack.c.l.b16 %v225
    %v917 = vunpack.c.h.b16 %v225
    %v918 = vunpack.c.l.b16 %v226
    %v919 = vunpack.c.l.b16 %v227
    %v920 = vunpack.c.h.b16 %v227
    %v921 = vunpack.c.l.b16 %v228
    %v922 = vunpack.c.h.b16 %v228
    %v923 = vunpack.c.l.b16 %v229
    %v924 = vunpack.c.l.b16 %v230
    %v925 = vunpack.c.h.b16 %v230
    %v926 = vunpack.c.l.b16 %v231
    %v927 = vunpack.c.h.b16 %v231
    %v928 = vunpack.c.l.b16 %v232
    %v929 = vunpack.c.l.b16 %v233
    %v930 = vunpack.c.h.b16 %v233
    %v931 = vunpack.c.l.b16 %v234
    %v932 = vunpack.c.h.b16 %v234
    %v933 = vunpack.c.l.b16 %v235
    %v934 = vunpack.c.l.b16 %v236
    %v935 = vunpack.c.h.b16 %v236
    %v936 = vunpack.c.l.b16 %v237
    %v937 = vunpack.c.h.b16 %v237
    %v938 = vunpack.c.l.b16 %v238
    %v939 = vunpack.c.l.b16 %v239
    %v940 = vunpack.c.h.b16 %v239
    %v941 = vunpack.c.l.b16 %v240
    %v942 = vunpack.c.h.b16 %v240
    %v943 = vunpack.c.l.b16 %v241
    %v944 = vunpack.c.l.b16 %v242
    %v945 = vunpack.c.h.b16 %v242
    %v946 = vunpack.c.l.b16 %v243
    %v947 = vunpack.c.h.b16 %v243
    %v948 = vunpack.c.l.b16 %v244
    %v949 = vunpack.c.l.b16 %v245
    %v950 = vunpack.c.h.b16 %v245
    %v951 = vunpack.c.l.b16 %v246
    %v952 = vunpack.c.h.b16 %v246
    %v953 = vunpack.c.l.b16 %v247
    %v954 = vunpack.c.l.b16 %v248
    %v955 = vunpack.c.h.b16 %v248
    %v956 = vunpack.c.l.b16 %v249
    %v957 = vunpack.c.h.b16 %v249
    %v958 = vunpack.c.l.b16 %v250
    %v959 = vunpack.c.l.b16 %v251
    %v960 = vunpack.c.h.b16 %v251
    %v961 = vunpack.c.l.b16 %v252
    %v962 = vunpack.c.h.b16 %v252
    %v963 = vunpack.c.l.b16 %v253
    %v964 = vunpack.c.l.b16 %v254
    %v965 = vunpack.c.h.b16 %v254
    %v966 = vunpack.c.l.b16 %v255
    %v967 = vunpack.c.h.b16 %v255
    %v968 = vunpack.c.l.b16 %v256
    %v969 = vunpack.c.l.b16 %v257
    %v970 = vunpack.c.h.b16 %v257
    %v971 = vunpack.c.l.b16 %v258
    %v972 = vunpack.c.h.b16 %v258
    %v973 = vunpack.c.l.b16 %v259
    %v974 = vunpack.c.l.b16 %v260
    %v975 = vunpack.c.h.b16 %v260
    %v976 = vunpack.c.l.b16 %v261
    %v977 = vunpack.c.h.b16 %v261
    %v978 = vunpack.c.l.b16 %v262
    %v979 = vunpack.c.l.b16 %v263
    %v980 = vunpack.c.h.b16 %v263
    %v981 = vunpack.c.l.b16 %v264
    %v982 = vunpack.c.h.b16 %v264
    %v983 = vunpack.c.l.b16 %v265
    %v984 = vunpack.c.l.b16 %v266
    %v985 = vunpack.c.h.b16 %v266
    %v986 = vunpack.c.l.b16 %v267
    %v987 = vunpack.c.h.b16 %v267
    %v988 = vunpack.c.l.b16 %v268
    %v989 = vunpack.c.l.b16 %v269
    %v990 = vunpack.c.h.b16 %v269
    %v991 = vunpack.c.l.b16 %v270
    %v992 = vunpack.c.h.b16 %v270
    %v993 = vunpack.c.l.b16 %v271
    %v994 = vunpack.c.l.b16 %v272
    %v995 = vunpack.c.h.b16 %v272
    %v996 = vunpack.c.l.b16 %v273
    %v997 = vunpack.c.h.b16 %v273
    %v998 = vunpack.c.l.b16 %v274
    %v999 = vunpack.c.l.b16 %v275
    %v1000 = vunpack.c.h.b16 %v275
    %v1001 = vunpack.c.l.b16 %v276
    %v1002 = vunpack.c.h.b16 %v276
    %v1003 = vunpack.c.l.b16 %v277
    %v1004 = vunpack.c.l.b16 %v278
    %v1005 = vunpack.c.h.b16 %v278
    %v1006 = vunpack.c.l.b16 %v279
    %v1007 = vunpack.c.h.b16 %v279
    %v1008 = vunpack.c.l.b16 %v280
    %v1009 = vunpack.c.l.b16 %v281
    %v1010 = vunpack.c.h.b16 %v281
    %v1011 = vunpack.c.l.b16 %v282
    %v1012 = vunpack.c.h.b16 %v282
    %v1013 = vunpack.c.l.b16 %v283
    %v1014 = vunpack.c.l.b16 %v284
    %v1015 = vunpack.c.h.b16 %v284
    %v1016 = vunpack.c.l.b16 %v285
    %v1017 = vunpack.c.h.b16 %v285
    %v1018 = vunpack.c.l.b16 %v286
    %v1019 = vunpack.c.l.b16 %v287
    %v1020 = vunpack.c.h.b16 %v287
    %v1021 = vunpack.c.l.b16 %v288
    %v1022 = vunpack.c.h.b16 %v288
    %v1023 = vunpack.c.l.b16 %v289
    %v1024 = vunpack.c.l.b16 %v290
    %v1025 = vunpack.c.h.b16 %v290
    %v1026 = vunpack.c.l.b16 %v291
    %v1027 = vunpack.c.h.b16 %v291
    %v1028 = vunpack.c.l.b16 %v292
    %v1029 = vunpack.c.l.b16 %v293
    %v1030 = vunpack.c.h.b16 %v293
    %v1031 = vunpack.c.l.b16 %v294
    %v1032 = vunpack.c.h.b16 %v294
    %v1033 = vunpack.c.l.b16 %v295
    %v1034 = vunpack.c.l.b16 %v296
    %v1035 = vunpack.c.h.b16 %v296
    %v1036 = vunpack.c.l.b16 %v297
    %v1037 = vunpack.c.h.b16 %v297
    %v1038 = vunpack.c.l.b16 %v298
    %v1039 = vunpack.c.l.b16 %v299
    %v1040 = vunpack.c.h.b16 %v299
    %v1041 = vunpack.c.l.b16 %v300
    %v1042 = vunpack.c.h.b16 %v300
    %v1043 = vunpack.c.l.b16 %v301
    %v1044 = vunpack.c.l.b16 %v302
    %v1045 = vunpack.c.h.b16 %v302
    %v1046 = vunpack.c.l.b16 %v303
    %v1047 = vunpack.c.h.b16 %v303
    %v1048 = vunpack.c.l.b16 %v304
    %v1049 = vunpack.c.l.b16 %v305
    %v1050 = vunpack.c.h.b16 %v305
    %v1051 = vunpack.c.l.b16 %v306
    %v1052 = vunpack.c.h.b16 %v306
    %v1053 = vunpack.c.l.b16 %v307
    %v1054 = vunpack.c.l.b16 %v308
    %v1055 = vunpack.c.h.b16 %v308
    %v1056 = vunpack.c.l.b16 %v309
    %v1057 = vunpack.c.h.b16 %v309
    %v1058 = vunpack.c.l.b16 %v310
    %v1059 = vunpack.c.l.b16 %v311
    %v1060 = vunpack.c.h.b16 %v311
    %v1061 = vunpack.c.l.b16 %v312
    %v1062 = vunpack.c.h.b16 %v312
    %v1063 = vunpack.c.l.b16 %v313
    %v1064 = vunpack.c.l.b16 %v314
    %v1065 = vunpack.c.h.b16 %v314
    %v1066 = vunpack.c.l.b16 %v315
    %v1067 = vunpack.c.h.b16 %v315
    %v1068 = vunpack.c.l.b16 %v316
    %v1069 = vunpack.c.l.b16 %v317
    %v1070 = vunpack.c.h.b16 %v317
    %v1071 = vunpack.c.l.b16 %v318
    %v1072 = vunpack.c.h.b16 %v318
    %v1073 = vunpack.c.l.b16 %v319
    %v1074 = vunpack.c.l.b16 %v320
    %v1075 = vunpack.c.h.b16 %v320
    %v1076 = vunpack.c.l.b16 %v321
    %v1077 = vunpack.c.h.b16 %v321
    %v1078 = vunpack.c.l.b16 %v322
    %v1079 = vunpack.c.l.b16 %v323
    %v1080 = vunpack.c.h.b16 %v323
    %v1081 = vunpack.c.l.b16 %v324
    %v1082 = vunpack.c.h.b16 %v324
    %v1083 = vunpack.c.l.b16 %v325
    %v1084 = vpack.c.b16 %v649, %v644
    %v1085 = vpack.c.b16 %v650, %v645
    %v1086 = vpack.c.b16 %v651, %v646
    %v1087 = vpack.c.b16 %v652, %v647
    %v1088 = vpack.c.b16 %v653, %v648
    %v1089 = vpack.c.b16 %v659, %v654
    %v1090 = vpack.c.b16 %v660, %v655
    %v1091 = vpack.c.b16 %v661, %v656
    %v1092 = vpack.c.b16 %v662, %v657
    %v1093 = vpack.c.b16 %v663, %v658
    %v1094 = vpack.c.b16 %v669, %v664
    %v1095 = vpack.c.b16 %v670, %v665
    %v1096 = vpack.c.b16 %v671, %v666
    %v1097 = vpack.c.b16 %v672, %v667
    %v1098 = vpack.c.b16 %v673, %v668
    %v1099 = vpack.c.b16 %v679, %v674
    %v1100 = vpack.c.b16 %v680, %v675
    %v1101 = vpack.c.b16 %v681, %v676
    %v1102 = vpack.c.b16 %v682, %v677
    %v1103 = vpack.c.b16 %v683, %v678
    %v1104 = vpack.c.b16 %v689, %v684
    %v1105 = vpack.c.b16 %v690, %v685
    %v1106 = vpack.c.b16 %v691, %v686
    %v1107 = vpack.c.b16 %v692, %v687
    %v1108 = vpack.c.b16 %v693, %v688
    %v1109 = vpack.c.b16 %v699, %v694
    %v1110 = vpack.c.b16 %v700, %v695
    %v1111 = vpack.c.b16 %v701, %v696
    %v1112 = vpack.c.b16 %v702, %v697
    %v1113 = vpack.c.b16 %v703, %v698
    %v1114 = vpack.c.b16 %v709, %v704
    %v1115 = vpack.c.b16 %v710, %v705
    %v1116 = vpack.c.b16 %v711, %v706
    %v1117 = vpack.c.b16 %v712, %v707
    %v1118 = vpack.c.b16 %v713, %v708
    %v1119 = vpack.c.b16 %v719, %v714
    %v1120 = vpack.c.b16 %v720, %v715
    %v1121 = vpack.c.b16 %v721, %v716
    %v1122 = vpack.c.b16 %v722, %v717
    %v1123 = vpack.c.b16 %v723, %v718
    %v1124 = vpack.c.b16 %v729, %v724
    %v1125 = vpack.c.b16 %v730, %v725
    %v1126 = vpack.c.b16 %v731, %v726
    %v1127 = vpack.c.b16 %v732, %v727
    %v1128 = vpack.c.b16 %v733, %v728
    %v1129 = vpack.c.b16 %v739, %v734
    %v1130 = vpack.c.b16 %v740, %v735
    %v1131 = vpack.c.b16 %v741, %v736
    %v1132 = vpack.c.b16 %v742, %v737
    %v1133 = vpack.c.b16 %v743, %v738
    %v1134 = vpack.c.b16 %v749, %v744
    %v1135 = vpack.c.b16 %v750, %v745
    %v1136 = vpack.c.b16 %v751, %v746
    %v1137 = vpack.c.b16 %v752, %v747
    %v1138 = vpack.c.b16 %v753, %v748
    %v1139 = vpack.c.b16 %v759, %v754
    %v1140 = vpack.c.b16 %v760, %v755
    %v1141 = vpack.c.b16 %v761, %v756
    %v1142 = vpack.c.b16 %v762, %v757
    %v1143 = vpack.c.b16 %v763, %v758
    %v1144 = vpack.c.b16 %v769, %v764
    %v1145 = vpack.c.b16 %v770, %v765
    %v1146 = vpack.c.b16 %v771, %v766
    %v1147 = vpack.c.b16 %v772, %v767
    %v1148 = vpack.c.b16 %v773, %v768
    %v1149 = vpack.c.b16 %v779, %v774
    %v1150 = vpack.c.b16 %v780, %v775
    %v1151 = vpack.c.b16 %v781, %v776
    %v1152 = vpack.c.b16 %v782, %v777
    %v1153 = vpack.c.b16 %v783, %v778
    %v1154 = vpack.c.b16 %v789, %v784
    %v1155 = vpack.c.b16 %v790, %v785
    %v1156 = vpack.c.b16 %v791, %v786
    %v1157 = vpack.c.b16 %v792, %v787
    %v1158 = vpack.c.b16 %v793, %v788
    %v1159 = vpack.c.b16 %v799, %v794
    %v1160 = vpack.c.b16 %v800, %v795
    %v1161 = vpack.c.b16 %v801, %v796
    %v1162 = vpack.c.b16 %v802, %v797
    %v1163 = vpack.c.b16 %v803, %v798
    %v1164 = vpack.c.b16 %v809, %v804
    %v1165 = vpack.c.b16 %v810, %v805
    %v1166 = vpack.c.b16 %v811, %v806
    %v1167 = vpack.c.b16 %v812, %v807
    %v1168 = vpack.c.b16 %v813, %v808
    %v1169 = vpack.c.b16 %v819, %v814
    %v1170 = vpack.c.b16 %v820, %v815
    %v1171 = vpack.c.b16 %v821, %v816
    %v1172 = vpack.c.b16 %v822, %v817
    %v1173 = vpack.c.b16 %v823, %v818
    %v1174 = vpack.c.b16 %v829, %v824
    %v1175 = vpack.c.b16 %v830, %v825
    %v1176 = vpack.c.b16 %v831, %v826
    %v1177 = vpack.c.b16 %v832, %v827
    %v1178 = vpack.c.b16 %v833, %v828
    %v1179 = vpack.c.b16 %v839, %v834
    %v1180 = vpack.c.b16 %v840, %v835
    %v1181 = vpack.c.b16 %v841, %v836
    %v1182 = vpack.c.b16 %v842, %v837
    %v1183 = vpack.c.b16 %v843, %v838
    %v1184 = vpack.c.b16 %v849, %v844
    %v1185 = vpack.c.b16 %v850, %v845
    %v1186 = vpack.c.b16 %v851, %v846
    %v1187 = vpack.c.b16 %v852, %v847
    %v1188 = vpack.c.b16 %v853, %v848
    %v1189 = vpack.c.b16 %v859, %v854
    %v1190 = vpack.c.b16 %v860, %v855
    %v1191 = vpack.c.b16 %v861, %v856
    %v1192 = vpack.c.b16 %v862, %v857
    %v1193 = vpack.c.b16 %v863, %v858
    %v1194 = vpack.c.b16 %v869, %v864
    %v1195 = vpack.c.b16 %v870, %v865
    %v1196 = vpack.c.b16 %v871, %v866
    %v1197 = vpack.c.b16 %v872, %v867
    %v1198 = vpack.c.b16 %v873, %v868
    %v1199 = vpack.c.b16 %v879, %v874
    %v1200 = vpack.c.b16 %v880, %v875
    %v1201 = vpack.c.b16 %v881, %v876
    %v1202 = vpack.c.b16 %v882, %v877
    %v1203 = vpack.c.b16 %v883, %v878
    %v1204 = vpack.c.b16 %v889, %v884
    %v1205 = vpack.c.b16 %v890, %v885
    %v1206 = vpack.c.b16 %v891, %v886
    %v1207 = vpack.c.b16 %v892, %v887
    %v1208 = vpack.c.b16 %v893, %v888
    %v1209 = vpack.c.b16 %v899, %v894
    %v1210 = vpack.c.b16 %v900, %v895
    %v1211 = vpack.c.b16 %v901, %v896
    %v1212 = vpack.c.b16 %v902, %v897
    %v1213 = vpack.c.b16 %v903, %v898
    %v1214 = vpack.c.b16 %v909, %v904
    %v1215 = vpack.c.b16 %v910, %v905
    %v1216 = vpack.c.b16 %v911, %v906
    %v1217 = vpack.c.b16 %v912, %v907
    %v1218 = vpack.c.b16 %v913, %v908
    %v1219 = vpack.c.b16 %v919, %v914
    %v1220 = vpack.c.b16 %v920, %v915
    %v1221 = vpack.c.b16 %v921, %v916
    %v1222 = vpack.c.b16 %v922, %v917
    %v1223 = vpack.c.b16 %v923, %v918
    %v1224 = vpack.c.b16 %v929, %v924
    %v1225 = vpack.c.b16 %v930, %v925
    %v1226 = vpack.c.b16 %v931, %v926
    %v1227 = vpack.c.b16 %v932, %v927
    %v1228 = vpack.c.b16 %v933, %v928
    %v1229 = vpack.c.b16 %v939, %v934
    %v1230 = vpack.c.b16 %v940, %v935
    %v1231 = vpack.c.b16 %v941, %v936
    %v1232 = vpack.c.b16 %v942, %v937
    %v1233 = vpack.c.b16 %v943, %v938
    %v1234 = vpack.c.b16 %v949, %v944
    %v1235 = vpack.c.b16 %v950, %v945
    %v1236 = vpack.c.b16 %v951, %v946
    %v1237 = vpack.c.b16 %v952, %v947
    %v1238 = vpack.c.b16 %v953, %v948
    %v1239 = vpack.c.b16 %v959, %v954
    %v1240 = vpack.c.b16 %v960, %v955
    %v1241 = vpack.c.b16 %v961, %v956
    %v1242 = vpack.c.b16 %v962, %v957
    %v1243 = vpack.c.b16 %v963, %v958
    %v1244 = vpack.c.b16 %v969, %v964
    %v1245 = vpack.c.b16 %v970, %v965
    %v1246 = vpack.c.b16 %v971, %v966
    %v1247 = vpack.c.b16 %v972, %v967
    %v1248 = vpack.c.b16 %v973, %v968
    %v1249 = vpack.c.b16 %v979, %v974
    %v1250 = vpack.c.b16 %v980, %v975
    %v1251 = vpack.c.b16 %v981, %v976
    %v1252 = vpack.c.b16 %v982, %v977
    %v1253 = vpack.c.b16 %v983, %v978
    %v1254 = vpack.c.b16 %v989, %v984
    %v1255 = vpack.c.b16 %v990, %v985
    %v1256 = vpack.c.b16 %v991, %v986
    %v1257 = vpack.c.b16 %v992, %v987
    %v1258 = vpack.c.b16 %v993, %v988
    %v1259 = vpack.c.b16 %v999, %v994
    %v1260 = vpack.c.b16 %v1000, %v995
    %v1261 = vpack.c.b16 %v1001, %v996
    %v1262 = vpack.c.b16 %v1002, %v997
    %v1263 = vpack.c.b16 %v1003, %v998
    %v1264 = vpack.c.b16 %v1009, %v1004
    %v1265 = vpack.c.b16 %v1010, %v1005
    %v1266 = vpack.c.b16 %v1011, %v1006
    %v1267 = vpack.c.b16 %v1012, %v1007
    %v1268 = vpack.c.b16 %v1013, %v1008
    %v1269 = vpack.c.b16 %v1019, %v1014
    %v1270 = vpack.c.b16 %v1020, %v1015
    %v1271 = vpack.c.b16 %v1021, %v1016
    %v1272 = vpack.c.b16 %v1022, %v1017
    %v1273 = vpack.c.b16 %v1023, %v1018
    %v1274 = vpack.c.b16 %v1029, %v1024
    %v1275 = vpack.c.b16 %v1030, %v1025
    %v1276 = vpack.c.b16 %v1031, %v1026
    %v1277 = vpack.c.b16 %v1032, %v1027
    %v1278 = vpack.c.b16 %v1033, %v1028
    %v1279 = vpack.c.b16 %v1039, %v1034
    %v1280 = vpack.c.b16 %v1040, %v1035
    %v1281 = vpack.c.b16 %v1041, %v1036
    %v1282 = vpack.c.b16 %v1042, %v1037
    %v1283 = vpack.c.b16 %v1043, %v1038
    %v1284 = vpack.c.b16 %v1049, %v1044
    %v1285 = vpack.c.b16 %v1050, %v1045
    %v1286 = vpack.c.b16 %v1051, %v1046
    %v1287 = vpack.c.b16 %v1052, %v1047
    %v1288 = vpack.c.b16 %v1053, %v1048
    %v1289 = vpack.c.b16 %v1059, %v1054
    %v1290 = vpack.c.b16 %v1060, %v1055
    %v1291 = vpack.c.b16 %v1061, %v1056
    %v1292 = vpack.c.b16 %v1062, %v1057
    %v1293 = vpack.c.b16 %v1063, %v1058
    %v1294 = vpack.c.b16 %v1069, %v1064
    %v1295 = vpack.c.b16 %v1070, %v1065
    %v1296 = vpack.c.b16 %v1071, %v1066
    %v1297 = vpack.c.b16 %v1072, %v1067
    %v1298 = vpack.c.b16 %v1073, %v1068
    %v1299 = vpack.c.b16 %v1079, %v1074
    %v1300 = vpack.c.b16 %v1080, %v1075
    %v1301 = vpack.c.b16 %v1081, %v1076
    %v1302 = vpack.c.b16 %v1082, %v1077
    %v1303 = vpack.c.b16 %v1083, %v1078
    %v1525 = vlaneseq
    %v1526 = vshrl.u32 %v1525, 7
    %v1527 = vsub.s32 0, %v1526
    %v1528 = vrot.slane %v326, %v1527
    %v1529 = vlaneseq
    %v1530 = vshrl.u32 %v1529, 7
    %v1531 = vsub.s32 1, %v1530
    %v1532 = vrot.slane %v326, %v1531
    %v1533 = vlaneseq
    %v1534 = vshrl.u32 %v1533, 7
    %v1535 = vsub.s32 2, %v1534
    %v1536 = vrot.slane %v326, %v1535
    %v1537 = vlaneseq
    %v1538 = vshrl.u32 %v1537, 7
    %v1539 = vsub.s32 3, %v1538
    %v1540 = vrot.slane %v326, %v1539
    %v1541 = vlaneseq
    %v1542 = vshrl.u32 %v1541, 7
    %v1543 = vsub.s32 4, %v1542
    %v1544 = vrot.slane %v326, %v1543
    %vm1550 = vcmask 523264
    %v1552 = vsel %vm1550, %v372, 0
    %1554 = vmatprep.subr.bf16.mxu0 %v1085
    %1555 = vmatpush1.bf16.msra.mxu0 %v1084
    %1556 = vmatprep.subr.bf16.mxu0 %v1090
    %1557 = vmatpush1.bf16.msra.mxu0 %v1089
    %1558 = vmatprep.subr.bf16.mxu0 %v1095
    %1559 = vmatpush1.bf16.msra.mxu0 %v1094
    %1560 = vmatprep.subr.bf16.mxu0 %v1100
    %1561 = vmatpush1.bf16.msra.mxu0 %v1099
    %1562 = vmatprep.subr.bf16.mxu0 %v1105
    %1563 = vmatpush1.bf16.msra.mxu0 %v1104
    %1564 = vmatprep.subr.bf16.mxu0 %v1110
    %1565 = vmatpush1.bf16.msra.mxu0 %v1109
    %1566 = vmatprep.subr.bf16.mxu0 %v1115
    %1567 = vmatpush1.bf16.msra.mxu0 %v1114
    %1568 = vmatprep.subr.bf16.mxu0 %v1120
    %1569 = vmatpush1.bf16.msra.mxu0 %v1119
    %1570 = vmatprep.subr.bf16.mxu0 %v1125
    %1571 = vmatpush1.bf16.msra.mxu0 %v1124
    %1572 = vmatprep.subr.bf16.mxu0 %v1130
    %1573 = vmatpush1.bf16.msra.mxu0 %v1129
    %1574 = vmatprep.subr.bf16.mxu0 %v1135
    %1575 = vmatpush1.bf16.msra.mxu0 %v1134
    %1576 = vmatprep.subr.bf16.mxu0 %v1140
    %1577 = vmatpush1.bf16.msra.mxu0 %v1139
    %1578 = vmatprep.subr.bf16.mxu0 %v1145
    %1579 = vmatpush1.bf16.msra.mxu0 %v1144
    %1580 = vmatprep.subr.bf16.mxu0 %v1150
    %1581 = vmatpush1.bf16.msra.mxu0 %v1149
    %1582 = vmatprep.subr.bf16.mxu0 %v1155
    %1583 = vmatpush1.bf16.msra.mxu0 %v1154
    %1584 = vmatprep.subr.bf16.mxu0 %v1160
    %1585 = vmatpush1.bf16.msra.mxu0 %v1159
    %1586 = vmatprep.mubr.bf16.mxu0 %v365
    %1587 = vmatmul.mubr.bf16.gmra.mrb[0].mxu0 %v351
    %v1588 = vpop.f32.mrb[0].mxu0
    %v1589 = vadd.f32 %v1528, %v1588
    %v1590 = vpop.f32.mrb[0].mxu0
    %v1591 = vadd.f32 %v1532, %v1590
    %v1592 = vpop.f32.mrb[0].mxu0
    %v1593 = vpop.f32.mrb[0].mxu0
    %1594 = vdwg.mxu0
    %1595 = vmatprep.subr.bf16.mxu0 %v1165
    %1596 = vmatpush1.bf16.msra.mxu0 %v1164
    %1597 = vmatprep.subr.bf16.mxu0 %v1170
    %1598 = vmatpush1.bf16.msra.mxu0 %v1169
    %1599 = vmatprep.subr.bf16.mxu0 %v1175
    %1600 = vmatpush1.bf16.msra.mxu0 %v1174
    %1601 = vmatprep.subr.bf16.mxu0 %v1180
    %1602 = vmatpush1.bf16.msra.mxu0 %v1179
    %1603 = vmatprep.subr.bf16.mxu0 %v1185
    %1604 = vmatpush1.bf16.msra.mxu0 %v1184
    %1605 = vmatprep.subr.bf16.mxu0 %v1190
    %1606 = vmatpush1.bf16.msra.mxu0 %v1189
    %1607 = vmatprep.subr.bf16.mxu0 %v1195
    %1608 = vmatpush1.bf16.msra.mxu0 %v1194
    %1609 = vmatprep.subr.bf16.mxu0 %v1200
    %1610 = vmatpush1.bf16.msra.mxu0 %v1199
    %1611 = vmatprep.subr.bf16.mxu0 %v1205
    %1612 = vmatpush1.bf16.msra.mxu0 %v1204
    %1613 = vmatprep.subr.bf16.mxu0 %v1210
    %1614 = vmatpush1.bf16.msra.mxu0 %v1209
    %1615 = vmatprep.subr.bf16.mxu0 %v1215
    %1616 = vmatpush1.bf16.msra.mxu0 %v1214
    %1617 = vmatprep.subr.bf16.mxu0 %v1220
    %1618 = vmatpush1.bf16.msra.mxu0 %v1219
    %1619 = vmatprep.subr.bf16.mxu0 %v1225
    %1620 = vmatpush1.bf16.msra.mxu0 %v1224
    %1621 = vmatprep.subr.bf16.mxu0 %v1230
    %1622 = vmatpush1.bf16.msra.mxu0 %v1229
    %1623 = vmatprep.subr.bf16.mxu0 %v1235
    %1624 = vmatpush1.bf16.msra.mxu0 %v1234
    %1625 = vmatprep.subr.bf16.mxu0 %v1240
    %1626 = vmatpush1.bf16.msra.mxu0 %v1239
    %1627 = vmatprep.mubr.bf16.mxu0 %v374
    %1628 = vmatmul.mubr.bf16.gmra.mrb[0].mxu0 %v373
    %v1629 = vpop.f32.mrb[0].mxu0
    %v1630 = vadd.f32 %v1589, %v1629
    %v1631 = vpop.f32.mrb[0].mxu0
    %v1632 = vadd.f32 %v1591, %v1631
    %v1633 = vpop.f32.mrb[0].mxu0
    %v1634 = vpop.f32.mrb[0].mxu0
    %1635 = vdwg.mxu0
    %1636 = vmatprep.subr.bf16.mxu0 %v1245
    %1637 = vmatpush1.bf16.msra.mxu0 %v1244
    %1638 = vmatprep.subr.bf16.mxu0 %v1250
    %1639 = vmatpush1.bf16.msra.mxu0 %v1249
    %1640 = vmatprep.subr.bf16.mxu0 %v1255
    %1641 = vmatpush1.bf16.msra.mxu0 %v1254
    %1642 = vmatprep.subr.bf16.mxu0 %v1260
    %1643 = vmatpush1.bf16.msra.mxu0 %v1259
    %1644 = vmatprep.subr.bf16.mxu0 %v1265
    %1645 = vmatpush1.bf16.msra.mxu0 %v1264
    %1646 = vmatprep.subr.bf16.mxu0 %v1270
    %1647 = vmatpush1.bf16.msra.mxu0 %v1269
    %1648 = vmatprep.subr.bf16.mxu0 %v1275
    %1649 = vmatpush1.bf16.msra.mxu0 %v1274
    %1650 = vmatprep.subr.bf16.mxu0 %v1280
    %1651 = vmatpush1.bf16.msra.mxu0 %v1279
    %1652 = vmatprep.subr.bf16.mxu0 %v1285
    %1653 = vmatpush1.bf16.msra.mxu0 %v1284
    %1654 = vmatprep.subr.bf16.mxu0 %v1290
    %1655 = vmatpush1.bf16.msra.mxu0 %v1289
    %1656 = vmatprep.subr.bf16.mxu0 %v1295
    %1657 = vmatpush1.bf16.msra.mxu0 %v1294
    %1658 = vmatprep.subr.bf16.mxu0 %v1300
    %1659 = vmatpush1.bf16.msra.mxu0 %v1299
    %1660 = vmatprep.subr.bf16.mxu0 0
    %1661 = vmatpush1.bf16.msra.mxu0 0
    %1662 = vmatprep.subr.bf16.mxu0 0
    %1663 = vmatpush1.bf16.msra.mxu0 0
    %1664 = vmatprep.subr.bf16.mxu0 0
    %1665 = vmatpush1.bf16.msra.mxu0 0
    %1666 = vmatprep.subr.bf16.mxu0 0
    %1667 = vmatpush1.bf16.msra.mxu0 0
    %1668 = vmatprep.mubr.bf16.mxu0 %v1552
    %1669 = vmatmul.mubr.bf16.gmra.mrb[0].mxu0 %v358
    %v1670 = vpop.f32.mrb[0].mxu0
    %v1671 = vadd.f32 %v1630, %v1670
    %v1672 = vpop.f32.mrb[0].mxu0
    %v1673 = vadd.f32 %v1632, %v1672
    %v1674 = vpop.f32.mrb[0].mxu0
    %v1675 = vpop.f32.mrb[0].mxu0
    %1676 = vdwg.mxu0
    %1677 = vmatprep.subr.bf16.mxu0 %v1087
    %1678 = vmatpush1.bf16.msra.mxu0 %v1086
    %1679 = vmatprep.subr.bf16.mxu0 %v1092
    %1680 = vmatpush1.bf16.msra.mxu0 %v1091
    %1681 = vmatprep.subr.bf16.mxu0 %v1097
    %1682 = vmatpush1.bf16.msra.mxu0 %v1096
    %1683 = vmatprep.subr.bf16.mxu0 %v1102
    %1684 = vmatpush1.bf16.msra.mxu0 %v1101
    %1685 = vmatprep.subr.bf16.mxu0 %v1107
    %1686 = vmatpush1.bf16.msra.mxu0 %v1106
    %1687 = vmatprep.subr.bf16.mxu0 %v1112
    %1688 = vmatpush1.bf16.msra.mxu0 %v1111
    %1689 = vmatprep.subr.bf16.mxu0 %v1117
    %1690 = vmatpush1.bf16.msra.mxu0 %v1116
    %1691 = vmatprep.subr.bf16.mxu0 %v1122
    %1692 = vmatpush1.bf16.msra.mxu0 %v1121
    %1693 = vmatprep.subr.bf16.mxu0 %v1127
    %1694 = vmatpush1.bf16.msra.mxu0 %v1126
    %1695 = vmatprep.subr.bf16.mxu0 %v1132
    %1696 = vmatpush1.bf16.msra.mxu0 %v1131
    %1697 = vmatprep.subr.bf16.mxu0 %v1137
    %1698 = vmatpush1.bf16.msra.mxu0 %v1136
    %1699 = vmatprep.subr.bf16.mxu0 %v1142
    %1700 = vmatpush1.bf16.msra.mxu0 %v1141
    %1701 = vmatprep.subr.bf16.mxu0 %v1147
    %1702 = vmatpush1.bf16.msra.mxu0 %v1146
    %1703 = vmatprep.subr.bf16.mxu0 %v1152
    %1704 = vmatpush1.bf16.msra.mxu0 %v1151
    %1705 = vmatprep.subr.bf16.mxu0 %v1157
    %1706 = vmatpush1.bf16.msra.mxu0 %v1156
    %1707 = vmatprep.subr.bf16.mxu0 %v1162
    %1708 = vmatpush1.bf16.msra.mxu0 %v1161
    %1709 = vmatprep.mubr.bf16.mxu0 %v365
    %1710 = vmatmul.mubr.bf16.gmra.mrb[0].mxu0 %v351
    %v1711 = vpop.f32.mrb[0].mxu0
    %v1712 = vadd.f32 %v1536, %v1711
    %v1713 = vpop.f32.mrb[0].mxu0
    %v1714 = vadd.f32 %v1540, %v1713
    %v1715 = vpop.f32.mrb[0].mxu0
    %v1716 = vpop.f32.mrb[0].mxu0
    %1717 = vdwg.mxu0
    %1718 = vmatprep.subr.bf16.mxu0 %v1167
    %1719 = vmatpush1.bf16.msra.mxu0 %v1166
    %1720 = vmatprep.subr.bf16.mxu0 %v1172
    %1721 = vmatpush1.bf16.msra.mxu0 %v1171
    %1722 = vmatprep.subr.bf16.mxu0 %v1177
    %1723 = vmatpush1.bf16.msra.mxu0 %v1176
    %1724 = vmatprep.subr.bf16.mxu0 %v1182
    %1725 = vmatpush1.bf16.msra.mxu0 %v1181
    %1726 = vmatprep.subr.bf16.mxu0 %v1187
    %1727 = vmatpush1.bf16.msra.mxu0 %v1186
    %1728 = vmatprep.subr.bf16.mxu0 %v1192
    %1729 = vmatpush1.bf16.msra.mxu0 %v1191
    %1730 = vmatprep.subr.bf16.mxu0 %v1197
    %1731 = vmatpush1.bf16.msra.mxu0 %v1196
    %1732 = vmatprep.subr.bf16.mxu0 %v1202
    %1733 = vmatpush1.bf16.msra.mxu0 %v1201
    %1734 = vmatprep.subr.bf16.mxu0 %v1207
    %1735 = vmatpush1.bf16.msra.mxu0 %v1206
    %1736 = vmatprep.subr.bf16.mxu0 %v1212
    %1737 = vmatpush1.bf16.msra.mxu0 %v1211
    %1738 = vmatprep.subr.bf16.mxu0 %v1217
    %1739 = vmatpush1.bf16.msra.mxu0 %v1216
    %1740 = vmatprep.subr.bf16.mxu0 %v1222
    %1741 = vmatpush1.bf16.msra.mxu0 %v1221
    %1742 = vmatprep.subr.bf16.mxu0 %v1227
    %1743 = vmatpush1.bf16.msra.mxu0 %v1226
    %1744 = vmatprep.subr.bf16.mxu0 %v1232
    %1745 = vmatpush1.bf16.msra.mxu0 %v1231
    %1746 = vmatprep.subr.bf16.mxu0 %v1237
    %1747 = vmatpush1.bf16.msra.mxu0 %v1236
    %1748 = vmatprep.subr.bf16.mxu0 %v1242
    %1749 = vmatpush1.bf16.msra.mxu0 %v1241
    %1750 = vmatprep.mubr.bf16.mxu0 %v374
    %1751 = vmatmul.mubr.bf16.gmra.mrb[0].mxu0 %v373
    %v1752 = vpop.f32.mrb[0].mxu0
    %v1753 = vadd.f32 %v1712, %v1752
    %v1754 = vpop.f32.mrb[0].mxu0
    %v1755 = vadd.f32 %v1714, %v1754
    %v1756 = vpop.f32.mrb[0].mxu0
    %v1757 = vpop.f32.mrb[0].mxu0
    %1758 = vdwg.mxu0
    %1759 = vmatprep.subr.bf16.mxu0 %v1247
    %1760 = vmatpush1.bf16.msra.mxu0 %v1246
    %1761 = vmatprep.subr.bf16.mxu0 %v1252
    %1762 = vmatpush1.bf16.msra.mxu0 %v1251
    %1763 = vmatprep.subr.bf16.mxu0 %v1257
    %1764 = vmatpush1.bf16.msra.mxu0 %v1256
    %1765 = vmatprep.subr.bf16.mxu0 %v1262
    %1766 = vmatpush1.bf16.msra.mxu0 %v1261
    %1767 = vmatprep.subr.bf16.mxu0 %v1267
    %1768 = vmatpush1.bf16.msra.mxu0 %v1266
    %1769 = vmatprep.subr.bf16.mxu0 %v1272
    %1770 = vmatpush1.bf16.msra.mxu0 %v1271
    %1771 = vmatprep.subr.bf16.mxu0 %v1277
    %1772 = vmatpush1.bf16.msra.mxu0 %v1276
    %1773 = vmatprep.subr.bf16.mxu0 %v1282
    %1774 = vmatpush1.bf16.msra.mxu0 %v1281
    %1775 = vmatprep.subr.bf16.mxu0 %v1287
    %1776 = vmatpush1.bf16.msra.mxu0 %v1286
    %1777 = vmatprep.subr.bf16.mxu0 %v1292
    %1778 = vmatpush1.bf16.msra.mxu0 %v1291
    %1779 = vmatprep.subr.bf16.mxu0 %v1297
    %1780 = vmatpush1.bf16.msra.mxu0 %v1296
    %1781 = vmatprep.subr.bf16.mxu0 %v1302
    %1782 = vmatpush1.bf16.msra.mxu0 %v1301
    %1783 = vmatprep.subr.bf16.mxu0 0
    %1784 = vmatpush1.bf16.msra.mxu0 0
    %1785 = vmatprep.subr.bf16.mxu0 0
    %1786 = vmatpush1.bf16.msra.mxu0 0
    %1787 = vmatprep.subr.bf16.mxu0 0
    %1788 = vmatpush1.bf16.msra.mxu0 0
    %1789 = vmatprep.subr.bf16.mxu0 0
    %1790 = vmatpush1.bf16.msra.mxu0 0
    %1791 = vmatprep.mubr.bf16.mxu0 %v1552
    %1792 = vmatmul.mubr.bf16.gmra.mrb[0].mxu0 %v358
    %v1793 = vpop.f32.mrb[0].mxu0
    %v1794 = vadd.f32 %v1753, %v1793
    %v1795 = vpop.f32.mrb[0].mxu0
    %v1796 = vadd.f32 %v1755, %v1795
    %v1797 = vpop.f32.mrb[0].mxu0
    %v1798 = vpop.f32.mrb[0].mxu0
    %1799 = vdwg.mxu0
    %1800 = vmatprep.subr.bf16.mxu0 0
    %1801 = vmatpush1.bf16.msra.mxu0 %v1088
    %1802 = vmatprep.subr.bf16.mxu0 0
    %1803 = vmatpush1.bf16.msra.mxu0 %v1093
    %1804 = vmatprep.subr.bf16.mxu0 0
    %1805 = vmatpush1.bf16.msra.mxu0 %v1098
    %1806 = vmatprep.subr.bf16.mxu0 0
    %1807 = vmatpush1.bf16.msra.mxu0 %v1103
    %1808 = vmatprep.subr.bf16.mxu0 0
    %1809 = vmatpush1.bf16.msra.mxu0 %v1108
    %1810 = vmatprep.subr.bf16.mxu0 0
    %1811 = vmatpush1.bf16.msra.mxu0 %v1113
    %1812 = vmatprep.subr.bf16.mxu0 0
    %1813 = vmatpush1.bf16.msra.mxu0 %v1118
    %1814 = vmatprep.subr.bf16.mxu0 0
    %1815 = vmatpush1.bf16.msra.mxu0 %v1123
    %1816 = vmatprep.subr.bf16.mxu0 0
    %1817 = vmatpush1.bf16.msra.mxu0 %v1128
    %1818 = vmatprep.subr.bf16.mxu0 0
    %1819 = vmatpush1.bf16.msra.mxu0 %v1133
    %1820 = vmatprep.subr.bf16.mxu0 0
    %1821 = vmatpush1.bf16.msra.mxu0 %v1138
    %1822 = vmatprep.subr.bf16.mxu0 0
    %1823 = vmatpush1.bf16.msra.mxu0 %v1143
    %1824 = vmatprep.subr.bf16.mxu0 0
    %1825 = vmatpush1.bf16.msra.mxu0 %v1148
    %1826 = vmatprep.subr.bf16.mxu0 0
    %1827 = vmatpush1.bf16.msra.mxu0 %v1153
    %1828 = vmatprep.subr.bf16.mxu0 0
    %1829 = vmatpush1.bf16.msra.mxu0 %v1158
    %1830 = vmatprep.subr.bf16.mxu0 0
    %1831 = vmatpush1.bf16.msra.mxu0 %v1163
    %1832 = vmatprep.mubr.bf16.mxu0 %v365
    %1833 = vmatmul.mubr.bf16.gmra.mrb[0].mxu0 %v351
    %v1834 = vpop.f32.mrb[0].mxu0
    %v1835 = vadd.f32 %v1544, %v1834
    %v1836 = vpop.f32.mrb[0].mxu0
    %v1837 = vpop.f32.mrb[0].mxu0
    %v1838 = vpop.f32.mrb[0].mxu0
    %1839 = vdwg.mxu0
    %1840 = vmatprep.subr.bf16.mxu0 0
    %1841 = vmatpush1.bf16.msra.mxu0 %v1168
    %1842 = vmatprep.subr.bf16.mxu0 0
    %1843 = vmatpush1.bf16.msra.mxu0 %v1173
    %1844 = vmatprep.subr.bf16.mxu0 0
    %1845 = vmatpush1.bf16.msra.mxu0 %v1178
    %1846 = vmatprep.subr.bf16.mxu0 0
    %1847 = vmatpush1.bf16.msra.mxu0 %v1183
    %1848 = vmatprep.subr.bf16.mxu0 0
    %1849 = vmatpush1.bf16.msra.mxu0 %v1188
    %1850 = vmatprep.subr.bf16.mxu0 0
    %1851 = vmatpush1.bf16.msra.mxu0 %v1193
    %1852 = vmatprep.subr.bf16.mxu0 0
    %1853 = vmatpush1.bf16.msra.mxu0 %v1198
    %1854 = vmatprep.subr.bf16.mxu0 0
    %1855 = vmatpush1.bf16.msra.mxu0 %v1203
    %1856 = vmatprep.subr.bf16.mxu0 0
    %1857 = vmatpush1.bf16.msra.mxu0 %v1208
    %1858 = vmatprep.subr.bf16.mxu0 0
    %1859 = vmatpush1.bf16.msra.mxu0 %v1213
    %1860 = vmatprep.subr.bf16.mxu0 0
    %1861 = vmatpush1.bf16.msra.mxu0 %v1218
    %1862 = vmatprep.subr.bf16.mxu0 0
    %1863 = vmatpush1.bf16.msra.mxu0 %v1223
    %1864 = vmatprep.subr.bf16.mxu0 0
    %1865 = vmatpush1.bf16.msra.mxu0 %v1228
    %1866 = vmatprep.subr.bf16.mxu0 0
    %1867 = vmatpush1.bf16.msra.mxu0 %v1233
    %1868 = vmatprep.subr.bf16.mxu0 0
    %1869 = vmatpush1.bf16.msra.mxu0 %v1238
    %1870 = vmatprep.subr.bf16.mxu0 0
    %1871 = vmatpush1.bf16.msra.mxu0 %v1243
    %1872 = vmatprep.mubr.bf16.mxu0 %v374
    %1873 = vmatmul.mubr.bf16.gmra.mrb[0].mxu0 %v373
    %v1874 = vpop.f32.mrb[0].mxu0
    %v1875 = vadd.f32 %v1835, %v1874
    %v1876 = vpop.f32.mrb[0].mxu0
    %v1877 = vpop.f32.mrb[0].mxu0
    %v1878 = vpop.f32.mrb[0].mxu0
    %1879 = vdwg.mxu0
    %1880 = vmatprep.subr.bf16.mxu0 0
    %1881 = vmatpush1.bf16.msra.mxu0 %v1248
    %1882 = vmatprep.subr.bf16.mxu0 0
    %1883 = vmatpush1.bf16.msra.mxu0 %v1253
    %1884 = vmatprep.subr.bf16.mxu0 0
    %1885 = vmatpush1.bf16.msra.mxu0 %v1258
    %1886 = vmatprep.subr.bf16.mxu0 0
    %1887 = vmatpush1.bf16.msra.mxu0 %v1263
    %1888 = vmatprep.subr.bf16.mxu0 0
    %1889 = vmatpush1.bf16.msra.mxu0 %v1268
    %1890 = vmatprep.subr.bf16.mxu0 0
    %1891 = vmatpush1.bf16.msra.mxu0 %v1273
    %1892 = vmatprep.subr.bf16.mxu0 0
    %1893 = vmatpush1.bf16.msra.mxu0 %v1278
    %1894 = vmatprep.subr.bf16.mxu0 0
    %1895 = vmatpush1.bf16.msra.mxu0 %v1283
    %1896 = vmatprep.subr.bf16.mxu0 0
    %1897 = vmatpush1.bf16.msra.mxu0 %v1288
    %1898 = vmatprep.subr.bf16.mxu0 0
    %1899 = vmatpush1.bf16.msra.mxu0 %v1293
    %1900 = vmatprep.subr.bf16.mxu0 0
    %1901 = vmatpush1.bf16.msra.mxu0 %v1298
    %1902 = vmatprep.subr.bf16.mxu0 0
    %1903 = vmatpush1.bf16.msra.mxu0 %v1303
    %1904 = vmatprep.subr.bf16.mxu0 0
    %1905 = vmatpush1.bf16.msra.mxu0 0
    %1906 = vmatprep.subr.bf16.mxu0 0
    %1907 = vmatpush1.bf16.msra.mxu0 0
    %1908 = vmatprep.subr.bf16.mxu0 0
    %1909 = vmatpush1.bf16.msra.mxu0 0
    %1910 = vmatprep.subr.bf16.mxu0 0
    %1911 = vmatpush1.bf16.msra.mxu0 0
    %1912 = vmatprep.mubr.bf16.mxu0 %v1552
    %1913 = vmatmul.mubr.bf16.gmra.mrb[0].mxu0 %v358
    %v1914 = vpop.f32.mrb[0].mxu0
    %v1915 = vadd.f32 %v1875, %v1914
    %v1916 = vpop.f32.mrb[0].mxu0
    %v1917 = vpop.f32.mrb[0].mxu0
    %v1918 = vpop.f32.mrb[0].mxu0
    %1919 = vdwg.mxu0
    %v1920 = vmax.f32 %v1671, 0.0
    %v1921 = vmax.f32 %v1673, 0.0
    %v1922 = vmax.f32 %v1794, 0.0
    %v1923 = vmax.f32 %v1796, 0.0
    %v1924 = vmax.f32 %v1915, 0.0
    %v1925 = vpack.c.bf16 %v1920, %v1920
    %v1926 = vpack.c.bf16 %v1921, %v1921
    %v1927 = vpack.c.bf16 %v1922, %v1922
    %v1928 = vpack.c.bf16 %v1923, %v1923
    %v1929 = vpack.c.bf16 %v1924, %v1924
    %v1930 = vld [vmem:[#allocation7] sm:$0xff]
    %v1931 = vld [vmem:[#allocation7 + $0x8] sm:$0xff]
    %v1932 = vld [vmem:[#allocation7 + $0x10] sm:$0xf]
    %v1933 = vld [vmem:[#allocation7 + $0x14] sm:$0xff]
    %v1934 = vld [vmem:[#allocation7 + $0x1c] sm:$0xff]
    %v1935 = vld [vmem:[#allocation7 + $0x24] sm:$0xf]
    %v1936 = vld [vmem:[#allocation7 + $0x28] sm:$0xff]
    %v1937 = vld [vmem:[#allocation7 + $0x30] sm:$0xff]
    %v1938 = vld [vmem:[#allocation7 + $0x38] sm:$0xf]
    %v1939 = vld [vmem:[#allocation7 + $0x3c] sm:$0xff]
    %v1940 = vld [vmem:[#allocation7 + $0x44] sm:$0xff]
    %v1941 = vld [vmem:[#allocation7 + $0x4c] sm:$0xf]
    %v1942 = vld [vmem:[#allocation7 + $0x50] sm:$0xff]
    %v1943 = vld [vmem:[#allocation7 + $0x58] sm:$0xff]
    %v1944 = vld [vmem:[#allocation7 + $0x60] sm:$0xf]
    %v1945 = vld [vmem:[#allocation7 + $0x64] sm:$0xff]
    %v1946 = vld [vmem:[#allocation7 + $0x6c] sm:$0xff]
    %v1947 = vld [vmem:[#allocation7 + $0x74] sm:$0xf]
    %v1948 = vld [vmem:[#allocation7 + $0x78] sm:$0xff]
    %v1949 = vld [vmem:[#allocation7 + $0x80] sm:$0xff]
    %v1950 = vld [vmem:[#allocation7 + $0x88] sm:$0xf]
    %v1951 = vld [vmem:[#allocation7 + $0x8c] sm:$0xff]
    %v1952 = vld [vmem:[#allocation7 + $0x94] sm:$0xff]
    %v1953 = vld [vmem:[#allocation7 + $0x9c] sm:$0xf]
    %v1954 = vld [vmem:[#allocation7 + $0xa0] sm:$0xff]
    %v1955 = vld [vmem:[#allocation7 + $0xa8] sm:$0xff]
    %v1956 = vld [vmem:[#allocation7 + $0xb0] sm:$0xf]
    %v1957 = vld [vmem:[#allocation7 + $0xb4] sm:$0xff]
    %v1958 = vld [vmem:[#allocation7 + $0xbc] sm:$0xff]
    %v1959 = vld [vmem:[#allocation7 + $0xc4] sm:$0xf]
    %v1960 = vld [vmem:[#allocation7 + $0xc8] sm:$0xff]
    %v1961 = vld [vmem:[#allocation7 + $0xd0] sm:$0xff]
    %v1962 = vld [vmem:[#allocation7 + $0xd8] sm:$0xf]
    %v1963 = vld [vmem:[#allocation7 + $0xdc] sm:$0xff]
    %v1964 = vld [vmem:[#allocation7 + $0xe4] sm:$0xff]
    %v1965 = vld [vmem:[#allocation7 + $0xec] sm:$0xf]
    %v1966 = vld [vmem:[#allocation7 + $0xf0] sm:$0xff]
    %v1967 = vld [vmem:[#allocation7 + $0xf8] sm:$0xff]
    %v1968 = vld [vmem:[#allocation7 + $0x100] sm:$0xf]
    %v1969 = vld [vmem:[#allocation7 + $0x104] sm:$0xff]
    %v1970 = vld [vmem:[#allocation7 + $0x10c] sm:$0xff]
    %v1971 = vld [vmem:[#allocation7 + $0x114] sm:$0xf]
    %v1972 = vld [vmem:[#allocation7 + $0x118] sm:$0xff]
    %v1973 = vld [vmem:[#allocation7 + $0x120] sm:$0xff]
    %v1974 = vld [vmem:[#allocation7 + $0x128] sm:$0xf]
    %v1975 = vld [vmem:[#allocation7 + $0x12c] sm:$0xff]
    %v1976 = vld [vmem:[#allocation7 + $0x134] sm:$0xff]
    %v1977 = vld [vmem:[#allocation7 + $0x13c] sm:$0xf]
    %v1978 = vld [vmem:[#allocation7 + $0x140] sm:$0xff]
    %v1979 = vld [vmem:[#allocation7 + $0x148] sm:$0xff]
    %v1980 = vld [vmem:[#allocation7 + $0x150] sm:$0xf]
    %v1981 = vld [vmem:[#allocation7 + $0x154] sm:$0xff]
    %v1982 = vld [vmem:[#allocation7 + $0x15c] sm:$0xff]
    %v1983 = vld [vmem:[#allocation7 + $0x164] sm:$0xf]
    %v1984 = vld [vmem:[#allocation7 + $0x168] sm:$0xff]
    %v1985 = vld [vmem:[#allocation7 + $0x170] sm:$0xff]
    %v1986 = vld [vmem:[#allocation7 + $0x178] sm:$0xf]
    %v1987 = vld [vmem:[#allocation7 + $0x17c] sm:$0xff]
    %v1988 = vld [vmem:[#allocation7 + $0x184] sm:$0xff]
    %v1989 = vld [vmem:[#allocation7 + $0x18c] sm:$0xf]
    %v1990 = vld [vmem:[#allocation7 + $0x190] sm:$0xff]
    %v1991 = vld [vmem:[#allocation7 + $0x198] sm:$0xff]
    %v1992 = vld [vmem:[#allocation7 + $0x1a0] sm:$0xf]
    %v1993 = vld [vmem:[#allocation7 + $0x1a4] sm:$0xff]
    %v1994 = vld [vmem:[#allocation7 + $0x1ac] sm:$0xff]
    %v1995 = vld [vmem:[#allocation7 + $0x1b4] sm:$0xf]
    %v1996 = vld [vmem:[#allocation7 + $0x1b8] sm:$0xff]
    %v1997 = vld [vmem:[#allocation7 + $0x1c0] sm:$0xff]
    %v1998 = vld [vmem:[#allocation7 + $0x1c8] sm:$0xf]
    %v1999 = vld [vmem:[#allocation7 + $0x1cc] sm:$0xff]
    %v2000 = vld [vmem:[#allocation7 + $0x1d4] sm:$0xff]
    %v2001 = vld [vmem:[#allocation7 + $0x1dc] sm:$0xf]
    %v2002 = vld [vmem:[#allocation7 + $0x1e0] sm:$0xff]
    %v2003 = vld [vmem:[#allocation7 + $0x1e8] sm:$0xff]
    %v2004 = vld [vmem:[#allocation7 + $0x1f0] sm:$0xf]
    %v2005 = vld [vmem:[#allocation7 + $0x1f4] sm:$0xff]
    %v2006 = vld [vmem:[#allocation7 + $0x1fc] sm:$0xff]
    %v2007 = vld [vmem:[#allocation7 + $0x204] sm:$0xf]
    %v2008 = vld [vmem:[#allocation7 + $0x208] sm:$0xff]
    %v2009 = vld [vmem:[#allocation7 + $0x210] sm:$0xff]
    %v2010 = vld [vmem:[#allocation7 + $0x218] sm:$0xf]
    %v2011 = vld [vmem:[#allocation7 + $0x21c] sm:$0xff]
    %v2012 = vld [vmem:[#allocation7 + $0x224] sm:$0xff]
    %v2013 = vld [vmem:[#allocation7 + $0x22c] sm:$0xf]
    %v2014 = vld [vmem:[#allocation7 + $0x230] sm:$0xff]
    %v2015 = vld [vmem:[#allocation7 + $0x238] sm:$0xff]
    %v2016 = vld [vmem:[#allocation7 + $0x240] sm:$0xf]
    %v2017 = vld [vmem:[#allocation7 + $0x244] sm:$0xff]
    %v2018 = vld [vmem:[#allocation7 + $0x24c] sm:$0xff]
    %v2019 = vld [vmem:[#allocation7 + $0x254] sm:$0xf]
    %v2020 = vld [vmem:[#allocation7 + $0x258] sm:$0xff]
    %v2021 = vld [vmem:[#allocation7 + $0x260] sm:$0xff]
    %v2022 = vld [vmem:[#allocation7 + $0x268] sm:$0xf]
    %v2023 = vld [vmem:[#allocation7 + $0x26c] sm:$0xff]
    %v2024 = vld [vmem:[#allocation7 + $0x274] sm:$0xff]
    %v2025 = vld [vmem:[#allocation7 + $0x27c] sm:$0xf]
    %v2026 = vld [vmem:[#allocation7 + $0x280] sm:$0xff]
    %v2027 = vld [vmem:[#allocation7 + $0x288] sm:$0xff]
    %v2028 = vld [vmem:[#allocation7 + $0x290] sm:$0xf]
    %v2029 = vld [vmem:[#allocation7 + $0x294] sm:$0xff]
    %v2030 = vld [vmem:[#allocation7 + $0x29c] sm:$0xff]
    %v2031 = vld [vmem:[#allocation7 + $0x2a4] sm:$0xf]
    %v2032 = vld [vmem:[#allocation7 + $0x2a8] sm:$0xff]
    %v2033 = vld [vmem:[#allocation7 + $0x2b0] sm:$0xff]
    %v2034 = vld [vmem:[#allocation7 + $0x2b8] sm:$0xf]
    %v2035 = vld [vmem:[#allocation7 + $0x2bc] sm:$0xff]
    %v2036 = vld [vmem:[#allocation7 + $0x2c4] sm:$0xff]
    %v2037 = vld [vmem:[#allocation7 + $0x2cc] sm:$0xf]
    %v2038 = vld [vmem:[#allocation7 + $0x2d0] sm:$0xff]
    %v2039 = vld [vmem:[#allocation7 + $0x2d8] sm:$0xff]
    %v2040 = vld [vmem:[#allocation7 + $0x2e0] sm:$0xf]
    %v2041 = vld [vmem:[#allocation7 + $0x2e4] sm:$0xff]
    %v2042 = vld [vmem:[#allocation7 + $0x2ec] sm:$0xff]
    %v2043 = vld [vmem:[#allocation7 + $0x2f4] sm:$0xf]
    %v2044 = vld [vmem:[#allocation7 + $0x2f8] sm:$0xff]
    %v2045 = vld [vmem:[#allocation7 + $0x300] sm:$0xff]
    %v2046 = vld [vmem:[#allocation7 + $0x308] sm:$0xf]
    %v2047 = vld [vmem:[#allocation7 + $0x30c] sm:$0xff]
    %v2048 = vld [vmem:[#allocation7 + $0x314] sm:$0xff]
    %v2049 = vld [vmem:[#allocation7 + $0x31c] sm:$0xf]
    %v2050 = vld [vmem:[#allocation7 + $0x320] sm:$0xff]
    %v2051 = vld [vmem:[#allocation7 + $0x328] sm:$0xff]
    %v2052 = vld [vmem:[#allocation7 + $0x330] sm:$0xf]
    %v2053 = vld [vmem:[#allocation7 + $0x334] sm:$0xff]
    %v2054 = vld [vmem:[#allocation7 + $0x33c] sm:$0xff]
    %v2055 = vld [vmem:[#allocation7 + $0x344] sm:$0xf]
    %v2056 = vld [vmem:[#allocation7 + $0x348] sm:$0xff]
    %v2057 = vld [vmem:[#allocation7 + $0x350] sm:$0xff]
    %v2058 = vld [vmem:[#allocation7 + $0x358] sm:$0xf]
    %v2059 = vld [vmem:[#allocation7 + $0x35c] sm:$0xff]
    %v2060 = vld [vmem:[#allocation7 + $0x364] sm:$0xff]
    %v2061 = vld [vmem:[#allocation7 + $0x36c] sm:$0xf]
    %v2062 = vld [vmem:[#allocation7 + $0x370] sm:$0xff]
    %v2063 = vld [vmem:[#allocation7 + $0x378] sm:$0xff]
    %v2064 = vld [vmem:[#allocation7 + $0x380] sm:$0xf]
    %v2065 = vld [vmem:[#allocation7 + $0x384] sm:$0xff]
    %v2066 = vld [vmem:[#allocation7 + $0x38c] sm:$0xff]
    %v2067 = vld [vmem:[#allocation7 + $0x394] sm:$0xf]
    %v2068 = vld [vmem:[#allocation7 + $0x398] sm:$0xff]
    %v2069 = vld [vmem:[#allocation7 + $0x3a0] sm:$0xff]
    %v2070 = vld [vmem:[#allocation7 + $0x3a8] sm:$0xf]
    %v2071 = vld [vmem:[#allocation7 + $0x3ac] sm:$0xff]
    %v2072 = vld [vmem:[#allocation7 + $0x3b4] sm:$0xff]
    %v2073 = vld [vmem:[#allocation7 + $0x3bc] sm:$0xf]
    %v2074 = vld [vmem:[#allocation7 + $0x3c0] sm:$0xff]
    %v2075 = vld [vmem:[#allocation7 + $0x3c8] sm:$0xff]
    %v2076 = vld [vmem:[#allocation7 + $0x3d0] sm:$0xf]
    %v2077 = vld [vmem:[#allocation7 + $0x3d4] sm:$0xff]
    %v2078 = vld [vmem:[#allocation7 + $0x3dc] sm:$0xff]
    %v2079 = vld [vmem:[#allocation7 + $0x3e4] sm:$0xf]
    %v2080 = vld [vmem:[#allocation7 + $0x3e8] sm:$0xff]
    %v2081 = vld [vmem:[#allocation7 + $0x3f0] sm:$0xff]
    %v2082 = vld [vmem:[#allocation7 + $0x3f8] sm:$0xf]
    %v2083 = vld [vmem:[#allocation7 + $0x3fc] sm:$0xff]
    %v2084 = vld [vmem:[#allocation7 + $0x404] sm:$0xff]
    %v2085 = vld [vmem:[#allocation7 + $0x40c] sm:$0xf]
    %v2086 = vld [vmem:[#allocation7 + $0x410] sm:$0xff]
    %v2087 = vld [vmem:[#allocation7 + $0x418] sm:$0xff]
    %v2088 = vld [vmem:[#allocation7 + $0x420] sm:$0xf]
    %v2089 = vld [vmem:[#allocation7 + $0x424] sm:$0xff]
    %v2090 = vld [vmem:[#allocation7 + $0x42c] sm:$0xff]
    %v2091 = vld [vmem:[#allocation7 + $0x434] sm:$0xf]
    %v2092 = vld [vmem:[#allocation7 + $0x438] sm:$0xff]
    %v2093 = vld [vmem:[#allocation7 + $0x440] sm:$0xff]
    %v2094 = vld [vmem:[#allocation7 + $0x448] sm:$0xf]
    %v2095 = vld [vmem:[#allocation7 + $0x44c] sm:$0xff]
    %v2096 = vld [vmem:[#allocation7 + $0x454] sm:$0xff]
    %v2097 = vld [vmem:[#allocation7 + $0x45c] sm:$0xf]
    %v2098 = vld [vmem:[#allocation7 + $0x460] sm:$0xff]
    %v2099 = vld [vmem:[#allocation7 + $0x468] sm:$0xff]
    %v2100 = vld [vmem:[#allocation7 + $0x470] sm:$0xf]
    %v2101 = vld [vmem:[#allocation7 + $0x474] sm:$0xff]
    %v2102 = vld [vmem:[#allocation7 + $0x47c] sm:$0xff]
    %v2103 = vld [vmem:[#allocation7 + $0x484] sm:$0xf]
    %v2104 = vld [vmem:[#allocation7 + $0x488] sm:$0xff]
    %v2105 = vld [vmem:[#allocation7 + $0x490] sm:$0xff]
    %v2106 = vld [vmem:[#allocation7 + $0x498] sm:$0xf]
    %v2107 = vld [vmem:[#allocation7 + $0x49c] sm:$0xff]
    %v2108 = vld [vmem:[#allocation7 + $0x4a4] sm:$0xff]
    %v2109 = vld [vmem:[#allocation7 + $0x4ac] sm:$0xf]
    %v2110 = vld [vmem:[#allocation7 + $0x4b0] sm:$0xff]
    %v2111 = vld [vmem:[#allocation7 + $0x4b8] sm:$0xff]
    %v2112 = vld [vmem:[#allocation7 + $0x4c0] sm:$0xf]
    %v2113 = vld [vmem:[#allocation7 + $0x4c4] sm:$0xff]
    %v2114 = vld [vmem:[#allocation7 + $0x4cc] sm:$0xff]
    %v2115 = vld [vmem:[#allocation7 + $0x4d4] sm:$0xf]
    %v2116 = vld [vmem:[#allocation7 + $0x4d8] sm:$0xff]
    %v2117 = vld [vmem:[#allocation7 + $0x4e0] sm:$0xff]
    %v2118 = vld [vmem:[#allocation7 + $0x4e8] sm:$0xf]
    %v2119 = vld [vmem:[#allocation7 + $0x4ec] sm:$0xff]
    %v2120 = vld [vmem:[#allocation7 + $0x4f4] sm:$0xff]
    %v2121 = vld [vmem:[#allocation7 + $0x4fc] sm:$0xf]
    %v2122 = vld [vmem:[#allocation7 + $0x500] sm:$0xff]
    %v2123 = vld [vmem:[#allocation7 + $0x508] sm:$0xff]
    %v2124 = vld [vmem:[#allocation7 + $0x510] sm:$0xf]
    %v2125 = vld [vmem:[#allocation7 + $0x514] sm:$0xff]
    %v2126 = vld [vmem:[#allocation7 + $0x51c] sm:$0xff]
    %v2127 = vld [vmem:[#allocation7 + $0x524] sm:$0xf]
    %v2128 = vld [vmem:[#allocation7 + $0x528] sm:$0xff]
    %v2129 = vld [vmem:[#allocation7 + $0x530] sm:$0xff]
    %v2130 = vld [vmem:[#allocation7 + $0x538] sm:$0xf]
    %v2131 = vld [vmem:[#allocation7 + $0x53c] sm:$0xff]
    %v2132 = vld [vmem:[#allocation7 + $0x544] sm:$0xff]
    %v2133 = vld [vmem:[#allocation7 + $0x54c] sm:$0xf]
    %v2134 = vld [vmem:[#allocation7 + $0x550] sm:$0xff]
    %v2135 = vld [vmem:[#allocation7 + $0x558] sm:$0xff]
    %v2136 = vld [vmem:[#allocation7 + $0x560] sm:$0xf]
    %v2137 = vld [vmem:[#allocation7 + $0x564] sm:$0xff]
    %v2138 = vld [vmem:[#allocation7 + $0x56c] sm:$0xff]
    %v2139 = vld [vmem:[#allocation7 + $0x574] sm:$0xf]
    %v2140 = vld [vmem:[#allocation7 + $0x578] sm:$0xff]
    %v2141 = vld [vmem:[#allocation7 + $0x580] sm:$0xff]
    %v2142 = vld [vmem:[#allocation7 + $0x588] sm:$0xf]
    %v2143 = vld [vmem:[#allocation7 + $0x58c] sm:$0xff]
    %v2144 = vld [vmem:[#allocation7 + $0x594] sm:$0xff]
    %v2145 = vld [vmem:[#allocation7 + $0x59c] sm:$0xf]
    %v2146 = vld [vmem:[#allocation7 + $0x5a0] sm:$0xff]
    %v2147 = vld [vmem:[#allocation7 + $0x5a8] sm:$0xff]
    %v2148 = vld [vmem:[#allocation7 + $0x5b0] sm:$0xf]
    %v2149 = vld [vmem:[#allocation7 + $0x5b4] sm:$0xff]
    %v2150 = vld [vmem:[#allocation7 + $0x5bc] sm:$0xff]
    %v2151 = vld [vmem:[#allocation7 + $0x5c4] sm:$0xf]
    %v2152 = vld [vmem:[#allocation7 + $0x5c8] sm:$0xff]
    %v2153 = vld [vmem:[#allocation7 + $0x5d0] sm:$0xff]
    %v2154 = vld [vmem:[#allocation7 + $0x5d8] sm:$0xf]
    %v2155 = vld [vmem:[#allocation7 + $0x5dc] sm:$0xff]
    %v2156 = vld [vmem:[#allocation7 + $0x5e4] sm:$0xff]
    %v2157 = vld [vmem:[#allocation7 + $0x5ec] sm:$0xf]
    %v2158 = vld [vmem:[#allocation7 + $0x5f0] sm:$0xff]
    %v2159 = vld [vmem:[#allocation7 + $0x5f8] sm:$0xff]
    %v2160 = vld [vmem:[#allocation7 + $0x600] sm:$0xf]
    %v2161 = vld [vmem:[#allocation7 + $0x604] sm:$0xff]
    %v2162 = vld [vmem:[#allocation7 + $0x60c] sm:$0xff]
    %v2163 = vld [vmem:[#allocation7 + $0x614] sm:$0xf]
    %v2164 = vld [vmem:[#allocation7 + $0x618] sm:$0xff]
    %v2165 = vld [vmem:[#allocation7 + $0x620] sm:$0xff]
    %v2166 = vld [vmem:[#allocation7 + $0x628] sm:$0xf]
    %v2167 = vld [vmem:[#allocation7 + $0x62c] sm:$0xff]
    %v2168 = vld [vmem:[#allocation7 + $0x634] sm:$0xff]
    %v2169 = vld [vmem:[#allocation7 + $0x63c] sm:$0xf]
    %v2170 = vld [vmem:[%s4] sm:$0x1f]
    %v2411 = vunpack.c.l.b16 %v1930
    %v2412 = vunpack.c.h.b16 %v1930
    %v2413 = vunpack.c.l.b16 %v1931
    %v2414 = vunpack.c.h.b16 %v1931
    %v2415 = vunpack.c.l.b16 %v1932
    %v2416 = vunpack.c.l.b16 %v1933
    %v2417 = vunpack.c.h.b16 %v1933
    %v2418 = vunpack.c.l.b16 %v1934
    %v2419 = vunpack.c.h.b16 %v1934
    %v2420 = vunpack.c.l.b16 %v1935
    %v2421 = vunpack.c.l.b16 %v1936
    %v2422 = vunpack.c.h.b16 %v1936
    %v2423 = vunpack.c.l.b16 %v1937
    %v2424 = vunpack.c.h.b16 %v1937
    %v2425 = vunpack.c.l.b16 %v1938
    %v2426 = vunpack.c.l.b16 %v1939
    %v2427 = vunpack.c.h.b16 %v1939
    %v2428 = vunpack.c.l.b16 %v1940
    %v2429 = vunpack.c.h.b16 %v1940
    %v2430 = vunpack.c.l.b16 %v1941
    %v2431 = vunpack.c.l.b16 %v1942
    %v2432 = vunpack.c.h.b16 %v1942
    %v2433 = vunpack.c.l.b16 %v1943
    %v2434 = vunpack.c.h.b16 %v1943
    %v2435 = vunpack.c.l.b16 %v1944
    %v2436 = vunpack.c.l.b16 %v1945
    %v2437 = vunpack.c.h.b16 %v1945
    %v2438 = vunpack.c.l.b16 %v1946
    %v2439 = vunpack.c.h.b16 %v1946
    %v2440 = vunpack.c.l.b16 %v1947
    %v2441 = vunpack.c.l.b16 %v1948
    %v2442 = vunpack.c.h.b16 %v1948
    %v2443 = vunpack.c.l.b16 %v1949
    %v2444 = vunpack.c.h.b16 %v1949
    %v2445 = vunpack.c.l.b16 %v1950
    %v2446 = vunpack.c.l.b16 %v1951
    %v2447 = vunpack.c.h.b16 %v1951
    %v2448 = vunpack.c.l.b16 %v1952
    %v2449 = vunpack.c.h.b16 %v1952
    %v2450 = vunpack.c.l.b16 %v1953
    %v2451 = vunpack.c.l.b16 %v1954
    %v2452 = vunpack.c.h.b16 %v1954
    %v2453 = vunpack.c.l.b16 %v1955
    %v2454 = vunpack.c.h.b16 %v1955
    %v2455 = vunpack.c.l.b16 %v1956
    %v2456 = vunpack.c.l.b16 %v1957
    %v2457 = vunpack.c.h.b16 %v1957
    %v2458 = vunpack.c.l.b16 %v1958
    %v2459 = vunpack.c.h.b16 %v1958
    %v2460 = vunpack.c.l.b16 %v1959
    %v2461 = vunpack.c.l.b16 %v1960
    %v2462 = vunpack.c.h.b16 %v1960
    %v2463 = vunpack.c.l.b16 %v1961
    %v2464 = vunpack.c.h.b16 %v1961
    %v2465 = vunpack.c.l.b16 %v1962
    %v2466 = vunpack.c.l.b16 %v1963
    %v2467 = vunpack.c.h.b16 %v1963
    %v2468 = vunpack.c.l.b16 %v1964
    %v2469 = vunpack.c.h.b16 %v1964
    %v2470 = vunpack.c.l.b16 %v1965
    %v2471 = vunpack.c.l.b16 %v1966
    %v2472 = vunpack.c.h.b16 %v1966
    %v2473 = vunpack.c.l.b16 %v1967
    %v2474 = vunpack.c.h.b16 %v1967
    %v2475 = vunpack.c.l.b16 %v1968
    %v2476 = vunpack.c.l.b16 %v1969
    %v2477 = vunpack.c.h.b16 %v1969
    %v2478 = vunpack.c.l.b16 %v1970
    %v2479 = vunpack.c.h.b16 %v1970
    %v2480 = vunpack.c.l.b16 %v1971
    %v2481 = vunpack.c.l.b16 %v1972
    %v2482 = vunpack.c.h.b16 %v1972
    %v2483 = vunpack.c.l.b16 %v1973
    %v2484 = vunpack.c.h.b16 %v1973
    %v2485 = vunpack.c.l.b16 %v1974
    %v2486 = vunpack.c.l.b16 %v1975
    %v2487 = vunpack.c.h.b16 %v1975
    %v2488 = vunpack.c.l.b16 %v1976
    %v2489 = vunpack.c.h.b16 %v1976
    %v2490 = vunpack.c.l.b16 %v1977
    %v2491 = vunpack.c.l.b16 %v1978
    %v2492 = vunpack.c.h.b16 %v1978
    %v2493 = vunpack.c.l.b16 %v1979
    %v2494 = vunpack.c.h.b16 %v1979
    %v2495 = vunpack.c.l.b16 %v1980
    %v2496 = vunpack.c.l.b16 %v1981
    %v2497 = vunpack.c.h.b16 %v1981
    %v2498 = vunpack.c.l.b16 %v1982
    %v2499 = vunpack.c.h.b16 %v1982
    %v2500 = vunpack.c.l.b16 %v1983
    %v2501 = vunpack.c.l.b16 %v1984
    %v2502 = vunpack.c.h.b16 %v1984
    %v2503 = vunpack.c.l.b16 %v1985
    %v2504 = vunpack.c.h.b16 %v1985
    %v2505 = vunpack.c.l.b16 %v1986
    %v2506 = vunpack.c.l.b16 %v1987
    %v2507 = vunpack.c.h.b16 %v1987
    %v2508 = vunpack.c.l.b16 %v1988
    %v2509 = vunpack.c.h.b16 %v1988
    %v2510 = vunpack.c.l.b16 %v1989
    %v2511 = vunpack.c.l.b16 %v1990
    %v2512 = vunpack.c.h.b16 %v1990
    %v2513 = vunpack.c.l.b16 %v1991
    %v2514 = vunpack.c.h.b16 %v1991
    %v2515 = vunpack.c.l.b16 %v1992
    %v2516 = vunpack.c.l.b16 %v1993
    %v2517 = vunpack.c.h.b16 %v1993
    %v2518 = vunpack.c.l.b16 %v1994
    %v2519 = vunpack.c.h.b16 %v1994
    %v2520 = vunpack.c.l.b16 %v1995
    %v2521 = vunpack.c.l.b16 %v1996
    %v2522 = vunpack.c.h.b16 %v1996
    %v2523 = vunpack.c.l.b16 %v1997
    %v2524 = vunpack.c.h.b16 %v1997
    %v2525 = vunpack.c.l.b16 %v1998
    %v2526 = vunpack.c.l.b16 %v1999
    %v2527 = vunpack.c.h.b16 %v1999
    %v2528 = vunpack.c.l.b16 %v2000
    %v2529 = vunpack.c.h.b16 %v2000
    %v2530 = vunpack.c.l.b16 %v2001
    %v2531 = vunpack.c.l.b16 %v2002
    %v2532 = vunpack.c.h.b16 %v2002
    %v2533 = vunpack.c.l.b16 %v2003
    %v2534 = vunpack.c.h.b16 %v2003
    %v2535 = vunpack.c.l.b16 %v2004
    %v2536 = vunpack.c.l.b16 %v2005
    %v2537 = vunpack.c.h.b16 %v2005
    %v2538 = vunpack.c.l.b16 %v2006
    %v2539 = vunpack.c.h.b16 %v2006
    %v2540 = vunpack.c.l.b16 %v2007
    %v2541 = vunpack.c.l.b16 %v2008
    %v2542 = vunpack.c.h.b16 %v2008
    %v2543 = vunpack.c.l.b16 %v2009
    %v2544 = vunpack.c.h.b16 %v2009
    %v2545 = vunpack.c.l.b16 %v2010
    %v2546 = vunpack.c.l.b16 %v2011
    %v2547 = vunpack.c.h.b16 %v2011
    %v2548 = vunpack.c.l.b16 %v2012
    %v2549 = vunpack.c.h.b16 %v2012
    %v2550 = vunpack.c.l.b16 %v2013
    %v2551 = vunpack.c.l.b16 %v2014
    %v2552 = vunpack.c.h.b16 %v2014
    %v2553 = vunpack.c.l.b16 %v2015
    %v2554 = vunpack.c.h.b16 %v2015
    %v2555 = vunpack.c.l.b16 %v2016
    %v2556 = vunpack.c.l.b16 %v2017
    %v2557 = vunpack.c.h.b16 %v2017
    %v2558 = vunpack.c.l.b16 %v2018
    %v2559 = vunpack.c.h.b16 %v2018
    %v2560 = vunpack.c.l.b16 %v2019
    %v2561 = vunpack.c.l.b16 %v2020
    %v2562 = vunpack.c.h.b16 %v2020
    %v2563 = vunpack.c.l.b16 %v2021
    %v2564 = vunpack.c.h.b16 %v2021
    %v2565 = vunpack.c.l.b16 %v2022
    %v2566 = vunpack.c.l.b16 %v2023
    %v2567 = vunpack.c.h.b16 %v2023
    %v2568 = vunpack.c.l.b16 %v2024
    %v2569 = vunpack.c.h.b16 %v2024
    %v2570 = vunpack.c.l.b16 %v2025
    %v2571 = vunpack.c.l.b16 %v2026
    %v2572 = vunpack.c.h.b16 %v2026
    %v2573 = vunpack.c.l.b16 %v2027
    %v2574 = vunpack.c.h.b16 %v2027
    %v2575 = vunpack.c.l.b16 %v2028
    %v2576 = vunpack.c.l.b16 %v2029
    %v2577 = vunpack.c.h.b16 %v2029
    %v2578 = vunpack.c.l.b16 %v2030
    %v2579 = vunpack.c.h.b16 %v2030
    %v2580 = vunpack.c.l.b16 %v2031
    %v2581 = vunpack.c.l.b16 %v2032
    %v2582 = vunpack.c.h.b16 %v2032
    %v2583 = vunpack.c.l.b16 %v2033
    %v2584 = vunpack.c.h.b16 %v2033
    %v2585 = vunpack.c.l.b16 %v2034
    %v2586 = vunpack.c.l.b16 %v2035
    %v2587 = vunpack.c.h.b16 %v2035
    %v2588 = vunpack.c.l.b16 %v2036
    %v2589 = vunpack.c.h.b16 %v2036
    %v2590 = vunpack.c.l.b16 %v2037
    %v2591 = vunpack.c.l.b16 %v2038
    %v2592 = vunpack.c.h.b16 %v2038
    %v2593 = vunpack.c.l.b16 %v2039
    %v2594 = vunpack.c.h.b16 %v2039
    %v2595 = vunpack.c.l.b16 %v2040
    %v2596 = vunpack.c.l.b16 %v2041
    %v2597 = vunpack.c.h.b16 %v2041
    %v2598 = vunpack.c.l.b16 %v2042
    %v2599 = vunpack.c.h.b16 %v2042
    %v2600 = vunpack.c.l.b16 %v2043
    %v2601 = vunpack.c.l.b16 %v2044
    %v2602 = vunpack.c.h.b16 %v2044
    %v2603 = vunpack.c.l.b16 %v2045
    %v2604 = vunpack.c.h.b16 %v2045
    %v2605 = vunpack.c.l.b16 %v2046
    %v2606 = vunpack.c.l.b16 %v2047
    %v2607 = vunpack.c.h.b16 %v2047
    %v2608 = vunpack.c.l.b16 %v2048
    %v2609 = vunpack.c.h.b16 %v2048
    %v2610 = vunpack.c.l.b16 %v2049
    %v2611 = vunpack.c.l.b16 %v2050
    %v2612 = vunpack.c.h.b16 %v2050
    %v2613 = vunpack.c.l.b16 %v2051
    %v2614 = vunpack.c.h.b16 %v2051
    %v2615 = vunpack.c.l.b16 %v2052
    %v2616 = vunpack.c.l.b16 %v2053
    %v2617 = vunpack.c.h.b16 %v2053
    %v2618 = vunpack.c.l.b16 %v2054
    %v2619 = vunpack.c.h.b16 %v2054
    %v2620 = vunpack.c.l.b16 %v2055
    %v2621 = vunpack.c.l.b16 %v2056
    %v2622 = vunpack.c.h.b16 %v2056
    %v2623 = vunpack.c.l.b16 %v2057
    %v2624 = vunpack.c.h.b16 %v2057
    %v2625 = vunpack.c.l.b16 %v2058
    %v2626 = vunpack.c.l.b16 %v2059
    %v2627 = vunpack.c.h.b16 %v2059
    %v2628 = vunpack.c.l.b16 %v2060
    %v2629 = vunpack.c.h.b16 %v2060
    %v2630 = vunpack.c.l.b16 %v2061
    %v2631 = vunpack.c.l.b16 %v2062
    %v2632 = vunpack.c.h.b16 %v2062
    %v2633 = vunpack.c.l.b16 %v2063
    %v2634 = vunpack.c.h.b16 %v2063
    %v2635 = vunpack.c.l.b16 %v2064
    %v2636 = vunpack.c.l.b16 %v2065
    %v2637 = vunpack.c.h.b16 %v2065
    %v2638 = vunpack.c.l.b16 %v2066
    %v2639 = vunpack.c.h.b16 %v2066
    %v2640 = vunpack.c.l.b16 %v2067
    %v2641 = vunpack.c.l.b16 %v2068
    %v2642 = vunpack.c.h.b16 %v2068
    %v2643 = vunpack.c.l.b16 %v2069
    %v2644 = vunpack.c.h.b16 %v2069
    %v2645 = vunpack.c.l.b16 %v2070
    %v2646 = vunpack.c.l.b16 %v2071
    %v2647 = vunpack.c.h.b16 %v2071
    %v2648 = vunpack.c.l.b16 %v2072
    %v2649 = vunpack.c.h.b16 %v2072
    %v2650 = vunpack.c.l.b16 %v2073
    %v2651 = vunpack.c.l.b16 %v2074
    %v2652 = vunpack.c.h.b16 %v2074
    %v2653 = vunpack.c.l.b16 %v2075
    %v2654 = vunpack.c.h.b16 %v2075
    %v2655 = vunpack.c.l.b16 %v2076
    %v2656 = vunpack.c.l.b16 %v2077
    %v2657 = vunpack.c.h.b16 %v2077
    %v2658 = vunpack.c.l.b16 %v2078
    %v2659 = vunpack.c.h.b16 %v2078
    %v2660 = vunpack.c.l.b16 %v2079
    %v2661 = vunpack.c.l.b16 %v2080
    %v2662 = vunpack.c.h.b16 %v2080
    %v2663 = vunpack.c.l.b16 %v2081
    %v2664 = vunpack.c.h.b16 %v2081
    %v2665 = vunpack.c.l.b16 %v2082
    %v2666 = vunpack.c.l.b16 %v2083
    %v2667 = vunpack.c.h.b16 %v2083
    %v2668 = vunpack.c.l.b16 %v2084
    %v2669 = vunpack.c.h.b16 %v2084
    %v2670 = vunpack.c.l.b16 %v2085
    %v2671 = vunpack.c.l.b16 %v2086
    %v2672 = vunpack.c.h.b16 %v2086
    %v2673 = vunpack.c.l.b16 %v2087
    %v2674 = vunpack.c.h.b16 %v2087
    %v2675 = vunpack.c.l.b16 %v2088
    %v2676 = vunpack.c.l.b16 %v2089
    %v2677 = vunpack.c.h.b16 %v2089
    %v2678 = vunpack.c.l.b16 %v2090
    %v2679 = vunpack.c.h.b16 %v2090
    %v2680 = vunpack.c.l.b16 %v2091
    %v2681 = vunpack.c.l.b16 %v2092
    %v2682 = vunpack.c.h.b16 %v2092
    %v2683 = vunpack.c.l.b16 %v2093
    %v2684 = vunpack.c.h.b16 %v2093
    %v2685 = vunpack.c.l.b16 %v2094
    %v2686 = vunpack.c.l.b16 %v2095
    %v2687 = vunpack.c.h.b16 %v2095
    %v2688 = vunpack.c.l.b16 %v2096
    %v2689 = vunpack.c.h.b16 %v2096
    %v2690 = vunpack.c.l.b16 %v2097
    %v2691 = vunpack.c.l.b16 %v2098
    %v2692 = vunpack.c.h.b16 %v2098
    %v2693 = vunpack.c.l.b16 %v2099
    %v2694 = vunpack.c.h.b16 %v2099
    %v2695 = vunpack.c.l.b16 %v2100
    %v2696 = vunpack.c.l.b16 %v2101
    %v2697 = vunpack.c.h.b16 %v2101
    %v2698 = vunpack.c.l.b16 %v2102
    %v2699 = vunpack.c.h.b16 %v2102
    %v2700 = vunpack.c.l.b16 %v2103
    %v2701 = vunpack.c.l.b16 %v2104
    %v2702 = vunpack.c.h.b16 %v2104
    %v2703 = vunpack.c.l.b16 %v2105
    %v2704 = vunpack.c.h.b16 %v2105
    %v2705 = vunpack.c.l.b16 %v2106
    %v2706 = vunpack.c.l.b16 %v2107
    %v2707 = vunpack.c.h.b16 %v2107
    %v2708 = vunpack.c.l.b16 %v2108
    %v2709 = vunpack.c.h.b16 %v2108
    %v2710 = vunpack.c.l.b16 %v2109
    %v2711 = vunpack.c.l.b16 %v2110
    %v2712 = vunpack.c.h.b16 %v2110
    %v2713 = vunpack.c.l.b16 %v2111
    %v2714 = vunpack.c.h.b16 %v2111
    %v2715 = vunpack.c.l.b16 %v2112
    %v2716 = vunpack.c.l.b16 %v2113
    %v2717 = vunpack.c.h.b16 %v2113
    %v2718 = vunpack.c.l.b16 %v2114
    %v2719 = vunpack.c.h.b16 %v2114
    %v2720 = vunpack.c.l.b16 %v2115
    %v2721 = vunpack.c.l.b16 %v2116
    %v2722 = vunpack.c.h.b16 %v2116
    %v2723 = vunpack.c.l.b16 %v2117
    %v2724 = vunpack.c.h.b16 %v2117
    %v2725 = vunpack.c.l.b16 %v2118
    %v2726 = vunpack.c.l.b16 %v2119
    %v2727 = vunpack.c.h.b16 %v2119
    %v2728 = vunpack.c.l.b16 %v2120
    %v2729 = vunpack.c.h.b16 %v2120
    %v2730 = vunpack.c.l.b16 %v2121
    %v2731 = vunpack.c.l.b16 %v2122
    %v2732 = vunpack.c.h.b16 %v2122
    %v2733 = vunpack.c.l.b16 %v2123
    %v2734 = vunpack.c.h.b16 %v2123
    %v2735 = vunpack.c.l.b16 %v2124
    %v2736 = vunpack.c.l.b16 %v2125
    %v2737 = vunpack.c.h.b16 %v2125
    %v2738 = vunpack.c.l.b16 %v2126
    %v2739 = vunpack.c.h.b16 %v2126
    %v2740 = vunpack.c.l.b16 %v2127
    %v2741 = vunpack.c.l.b16 %v2128
    %v2742 = vunpack.c.h.b16 %v2128
    %v2743 = vunpack.c.l.b16 %v2129
    %v2744 = vunpack.c.h.b16 %v2129
    %v2745 = vunpack.c.l.b16 %v2130
    %v2746 = vunpack.c.l.b16 %v2131
    %v2747 = vunpack.c.h.b16 %v2131
    %v2748 = vunpack.c.l.b16 %v2132
    %v2749 = vunpack.c.h.b16 %v2132
    %v2750 = vunpack.c.l.b16 %v2133
    %v2751 = vunpack.c.l.b16 %v2134
    %v2752 = vunpack.c.h.b16 %v2134
    %v2753 = vunpack.c.l.b16 %v2135
    %v2754 = vunpack.c.h.b16 %v2135
    %v2755 = vunpack.c.l.b16 %v2136
    %v2756 = vunpack.c.l.b16 %v2137
    %v2757 = vunpack.c.h.b16 %v2137
    %v2758 = vunpack.c.l.b16 %v2138
    %v2759 = vunpack.c.h.b16 %v2138
    %v2760 = vunpack.c.l.b16 %v2139
    %v2761 = vunpack.c.l.b16 %v2140
    %v2762 = vunpack.c.h.b16 %v2140
    %v2763 = vunpack.c.l.b16 %v2141
    %v2764 = vunpack.c.h.b16 %v2141
    %v2765 = vunpack.c.l.b16 %v2142
    %v2766 = vunpack.c.l.b16 %v2143
    %v2767 = vunpack.c.h.b16 %v2143
    %v2768 = vunpack.c.l.b16 %v2144
    %v2769 = vunpack.c.h.b16 %v2144
    %v2770 = vunpack.c.l.b16 %v2145
    %v2771 = vunpack.c.l.b16 %v2146
    %v2772 = vunpack.c.h.b16 %v2146
    %v2773 = vunpack.c.l.b16 %v2147
    %v2774 = vunpack.c.h.b16 %v2147
    %v2775 = vunpack.c.l.b16 %v2148
    %v2776 = vunpack.c.l.b16 %v2149
    %v2777 = vunpack.c.h.b16 %v2149
    %v2778 = vunpack.c.l.b16 %v2150
    %v2779 = vunpack.c.h.b16 %v2150
    %v2780 = vunpack.c.l.b16 %v2151
    %v2781 = vunpack.c.l.b16 %v2152
    %v2782 = vunpack.c.h.b16 %v2152
    %v2783 = vunpack.c.l.b16 %v2153
    %v2784 = vunpack.c.h.b16 %v2153
    %v2785 = vunpack.c.l.b16 %v2154
    %v2786 = vunpack.c.l.b16 %v2155
    %v2787 = vunpack.c.h.b16 %v2155
    %v2788 = vunpack.c.l.b16 %v2156
    %v2789 = vunpack.c.h.b16 %v2156
    %v2790 = vunpack.c.l.b16 %v2157
    %v2791 = vunpack.c.l.b16 %v2158
    %v2792 = vunpack.c.h.b16 %v2158
    %v2793 = vunpack.c.l.b16 %v2159
    %v2794 = vunpack.c.h.b16 %v2159
    %v2795 = vunpack.c.l.b16 %v2160
    %v2796 = vunpack.c.l.b16 %v2161
    %v2797 = vunpack.c.h.b16 %v2161
    %v2798 = vunpack.c.l.b16 %v2162
    %v2799 = vunpack.c.h.b16 %v2162
    %v2800 = vunpack.c.l.b16 %v2163
    %v2801 = vunpack.c.l.b16 %v2164
    %v2802 = vunpack.c.h.b16 %v2164
    %v2803 = vunpack.c.l.b16 %v2165
    %v2804 = vunpack.c.h.b16 %v2165
    %v2805 = vunpack.c.l.b16 %v2166
    %v2806 = vunpack.c.l.b16 %v2167
    %v2807 = vunpack.c.h.b16 %v2167
    %v2808 = vunpack.c.l.b16 %v2168
    %v2809 = vunpack.c.h.b16 %v2168
    %v2810 = vunpack.c.l.b16 %v2169
    %v2811 = vpack.c.b16 %v2416, %v2411
    %v2812 = vpack.c.b16 %v2417, %v2412
    %v2813 = vpack.c.b16 %v2418, %v2413
    %v2814 = vpack.c.b16 %v2419, %v2414
    %v2815 = vpack.c.b16 %v2420, %v2415
    %v2816 = vpack.c.b16 %v2426, %v2421
    %v2817 = vpack.c.b16 %v2427, %v2422
    %v2818 = vpack.c.b16 %v2428, %v2423
    %v2819 = vpack.c.b16 %v2429, %v2424
    %v2820 = vpack.c.b16 %v2430, %v2425
    %v2821 = vpack.c.b16 %v2436, %v2431
    %v2822 = vpack.c.b16 %v2437, %v2432
    %v2823 = vpack.c.b16 %v2438, %v2433
    %v2824 = vpack.c.b16 %v2439, %v2434
    %v2825 = vpack.c.b16 %v2440, %v2435
    %v2826 = vpack.c.b16 %v2446, %v2441
    %v2827 = vpack.c.b16 %v2447, %v2442
    %v2828 = vpack.c.b16 %v2448, %v2443
    %v2829 = vpack.c.b16 %v2449, %v2444
    %v2830 = vpack.c.b16 %v2450, %v2445
    %v2831 = vpack.c.b16 %v2456, %v2451
    %v2832 = vpack.c.b16 %v2457, %v2452
    %v2833 = vpack.c.b16 %v2458, %v2453
    %v2834 = vpack.c.b16 %v2459, %v2454
    %v2835 = vpack.c.b16 %v2460, %v2455
    %v2836 = vpack.c.b16 %v2466, %v2461
    %v2837 = vpack.c.b16 %v2467, %v2462
    %v2838 = vpack.c.b16 %v2468, %v2463
    %v2839 = vpack.c.b16 %v2469, %v2464
    %v2840 = vpack.c.b16 %v2470, %v2465
    %v2841 = vpack.c.b16 %v2476, %v2471
    %v2842 = vpack.c.b16 %v2477, %v2472
    %v2843 = vpack.c.b16 %v2478, %v2473
    %v2844 = vpack.c.b16 %v2479, %v2474
    %v2845 = vpack.c.b16 %v2480, %v2475
    %v2846 = vpack.c.b16 %v2486, %v2481
    %v2847 = vpack.c.b16 %v2487, %v2482
    %v2848 = vpack.c.b16 %v2488, %v2483
    %v2849 = vpack.c.b16 %v2489, %v2484
    %v2850 = vpack.c.b16 %v2490, %v2485
    %v2851 = vpack.c.b16 %v2496, %v2491
    %v2852 = vpack.c.b16 %v2497, %v2492
    %v2853 = vpack.c.b16 %v2498, %v2493
    %v2854 = vpack.c.b16 %v2499, %v2494
    %v2855 = vpack.c.b16 %v2500, %v2495
    %v2856 = vpack.c.b16 %v2506, %v2501
    %v2857 = vpack.c.b16 %v2507, %v2502
    %v2858 = vpack.c.b16 %v2508, %v2503
    %v2859 = vpack.c.b16 %v2509, %v2504
    %v2860 = vpack.c.b16 %v2510, %v2505
    %v2861 = vpack.c.b16 %v2516, %v2511
    %v2862 = vpack.c.b16 %v2517, %v2512
    %v2863 = vpack.c.b16 %v2518, %v2513
    %v2864 = vpack.c.b16 %v2519, %v2514
    %v2865 = vpack.c.b16 %v2520, %v2515
    %v2866 = vpack.c.b16 %v2526, %v2521
    %v2867 = vpack.c.b16 %v2527, %v2522
    %v2868 = vpack.c.b16 %v2528, %v2523
    %v2869 = vpack.c.b16 %v2529, %v2524
    %v2870 = vpack.c.b16 %v2530, %v2525
    %v2871 = vpack.c.b16 %v2536, %v2531
    %v2872 = vpack.c.b16 %v2537, %v2532
    %v2873 = vpack.c.b16 %v2538, %v2533
    %v2874 = vpack.c.b16 %v2539, %v2534
    %v2875 = vpack.c.b16 %v2540, %v2535
    %v2876 = vpack.c.b16 %v2546, %v2541
    %v2877 = vpack.c.b16 %v2547, %v2542
    %v2878 = vpack.c.b16 %v2548, %v2543
    %v2879 = vpack.c.b16 %v2549, %v2544
    %v2880 = vpack.c.b16 %v2550, %v2545
    %v2881 = vpack.c.b16 %v2556, %v2551
    %v2882 = vpack.c.b16 %v2557, %v2552
    %v2883 = vpack.c.b16 %v2558, %v2553
    %v2884 = vpack.c.b16 %v2559, %v2554
    %v2885 = vpack.c.b16 %v2560, %v2555
    %v2886 = vpack.c.b16 %v2566, %v2561
    %v2887 = vpack.c.b16 %v2567, %v2562
    %v2888 = vpack.c.b16 %v2568, %v2563
    %v2889 = vpack.c.b16 %v2569, %v2564
    %v2890 = vpack.c.b16 %v2570, %v2565
    %v2891 = vpack.c.b16 %v2576, %v2571
    %v2892 = vpack.c.b16 %v2577, %v2572
    %v2893 = vpack.c.b16 %v2578, %v2573
    %v2894 = vpack.c.b16 %v2579, %v2574
    %v2895 = vpack.c.b16 %v2580, %v2575
    %v2896 = vpack.c.b16 %v2586, %v2581
    %v2897 = vpack.c.b16 %v2587, %v2582
    %v2898 = vpack.c.b16 %v2588, %v2583
    %v2899 = vpack.c.b16 %v2589, %v2584
    %v2900 = vpack.c.b16 %v2590, %v2585
    %v2901 = vpack.c.b16 %v2596, %v2591
    %v2902 = vpack.c.b16 %v2597, %v2592
    %v2903 = vpack.c.b16 %v2598, %v2593
    %v2904 = vpack.c.b16 %v2599, %v2594
    %v2905 = vpack.c.b16 %v2600, %v2595
    %v2906 = vpack.c.b16 %v2606, %v2601
    %v2907 = vpack.c.b16 %v2607, %v2602
    %v2908 = vpack.c.b16 %v2608, %v2603
    %v2909 = vpack.c.b16 %v2609, %v2604
    %v2910 = vpack.c.b16 %v2610, %v2605
    %v2911 = vpack.c.b16 %v2616, %v2611
    %v2912 = vpack.c.b16 %v2617, %v2612
    %v2913 = vpack.c.b16 %v2618, %v2613
    %v2914 = vpack.c.b16 %v2619, %v2614
    %v2915 = vpack.c.b16 %v2620, %v2615
    %v2916 = vpack.c.b16 %v2626, %v2621
    %v2917 = vpack.c.b16 %v2627, %v2622
    %v2918 = vpack.c.b16 %v2628, %v2623
    %v2919 = vpack.c.b16 %v2629, %v2624
    %v2920 = vpack.c.b16 %v2630, %v2625
    %v2921 = vpack.c.b16 %v2636, %v2631
    %v2922 = vpack.c.b16 %v2637, %v2632
    %v2923 = vpack.c.b16 %v2638, %v2633
    %v2924 = vpack.c.b16 %v2639, %v2634
    %v2925 = vpack.c.b16 %v2640, %v2635
    %v2926 = vpack.c.b16 %v2646, %v2641
    %v2927 = vpack.c.b16 %v2647, %v2642
    %v2928 = vpack.c.b16 %v2648, %v2643
    %v2929 = vpack.c.b16 %v2649, %v2644
    %v2930 = vpack.c.b16 %v2650, %v2645
    %v2931 = vpack.c.b16 %v2656, %v2651
    %v2932 = vpack.c.b16 %v2657, %v2652
    %v2933 = vpack.c.b16 %v2658, %v2653
    %v2934 = vpack.c.b16 %v2659, %v2654
    %v2935 = vpack.c.b16 %v2660, %v2655
    %v2936 = vpack.c.b16 %v2666, %v2661
    %v2937 = vpack.c.b16 %v2667, %v2662
    %v2938 = vpack.c.b16 %v2668, %v2663
    %v2939 = vpack.c.b16 %v2669, %v2664
    %v2940 = vpack.c.b16 %v2670, %v2665
    %v2941 = vpack.c.b16 %v2676, %v2671
    %v2942 = vpack.c.b16 %v2677, %v2672
    %v2943 = vpack.c.b16 %v2678, %v2673
    %v2944 = vpack.c.b16 %v2679, %v2674
    %v2945 = vpack.c.b16 %v2680, %v2675
    %v2946 = vpack.c.b16 %v2686, %v2681
    %v2947 = vpack.c.b16 %v2687, %v2682
    %v2948 = vpack.c.b16 %v2688, %v2683
    %v2949 = vpack.c.b16 %v2689, %v2684
    %v2950 = vpack.c.b16 %v2690, %v2685
    %v2951 = vpack.c.b16 %v2696, %v2691
    %v2952 = vpack.c.b16 %v2697, %v2692
    %v2953 = vpack.c.b16 %v2698, %v2693
    %v2954 = vpack.c.b16 %v2699, %v2694
    %v2955 = vpack.c.b16 %v2700, %v2695
    %v2956 = vpack.c.b16 %v2706, %v2701
    %v2957 = vpack.c.b16 %v2707, %v2702
    %v2958 = vpack.c.b16 %v2708, %v2703
    %v2959 = vpack.c.b16 %v2709, %v2704
    %v2960 = vpack.c.b16 %v2710, %v2705
    %v2961 = vpack.c.b16 %v2716, %v2711
    %v2962 = vpack.c.b16 %v2717, %v2712
    %v2963 = vpack.c.b16 %v2718, %v2713
    %v2964 = vpack.c.b16 %v2719, %v2714
    %v2965 = vpack.c.b16 %v2720, %v2715
    %v2966 = vpack.c.b16 %v2726, %v2721
    %v2967 = vpack.c.b16 %v2727, %v2722
    %v2968 = vpack.c.b16 %v2728, %v2723
    %v2969 = vpack.c.b16 %v2729, %v2724
    %v2970 = vpack.c.b16 %v2730, %v2725
    %v2971 = vpack.c.b16 %v2736, %v2731
    %v2972 = vpack.c.b16 %v2737, %v2732
    %v2973 = vpack.c.b16 %v2738, %v2733
    %v2974 = vpack.c.b16 %v2739, %v2734
    %v2975 = vpack.c.b16 %v2740, %v2735
    %v2976 = vpack.c.b16 %v2746, %v2741
    %v2977 = vpack.c.b16 %v2747, %v2742
    %v2978 = vpack.c.b16 %v2748, %v2743
    %v2979 = vpack.c.b16 %v2749, %v2744
    %v2980 = vpack.c.b16 %v2750, %v2745
    %v2981 = vpack.c.b16 %v2756, %v2751
    %v2982 = vpack.c.b16 %v2757, %v2752
    %v2983 = vpack.c.b16 %v2758, %v2753
    %v2984 = vpack.c.b16 %v2759, %v2754
    %v2985 = vpack.c.b16 %v2760, %v2755
    %v2986 = vpack.c.b16 %v2766, %v2761
    %v2987 = vpack.c.b16 %v2767, %v2762
    %v2988 = vpack.c.b16 %v2768, %v2763
    %v2989 = vpack.c.b16 %v2769, %v2764
    %v2990 = vpack.c.b16 %v2770, %v2765
    %v2991 = vpack.c.b16 %v2776, %v2771
    %v2992 = vpack.c.b16 %v2777, %v2772
    %v2993 = vpack.c.b16 %v2778, %v2773
    %v2994 = vpack.c.b16 %v2779, %v2774
    %v2995 = vpack.c.b16 %v2780, %v2775
    %v2996 = vpack.c.b16 %v2786, %v2781
    %v2997 = vpack.c.b16 %v2787, %v2782
    %v2998 = vpack.c.b16 %v2788, %v2783
    %v2999 = vpack.c.b16 %v2789, %v2784
    %v3000 = vpack.c.b16 %v2790, %v2785
    %v3001 = vpack.c.b16 %v2796, %v2791
    %v3002 = vpack.c.b16 %v2797, %v2792
    %v3003 = vpack.c.b16 %v2798, %v2793
    %v3004 = vpack.c.b16 %v2799, %v2794
    %v3005 = vpack.c.b16 %v2800, %v2795
    %v3006 = vpack.c.b16 %v2806, %v2801
    %v3007 = vpack.c.b16 %v2807, %v2802
    %v3008 = vpack.c.b16 %v2808, %v2803
    %v3009 = vpack.c.b16 %v2809, %v2804
    %v3010 = vpack.c.b16 %v2810, %v2805
    %v3212 = vlaneseq
    %v3213 = vshrl.u32 %v3212, 7
    %v3214 = vsub.s32 0, %v3213
    %v3215 = vrot.slane %v2170, %v3214
    %v3216 = vlaneseq
    %v3217 = vshrl.u32 %v3216, 7
    %v3218 = vsub.s32 1, %v3217
    %v3219 = vrot.slane %v2170, %v3218
    %v3220 = vlaneseq
    %v3221 = vshrl.u32 %v3220, 7
    %v3222 = vsub.s32 2, %v3221
    %v3223 = vrot.slane %v2170, %v3222
    %v3224 = vlaneseq
    %v3225 = vshrl.u32 %v3224, 7
    %v3226 = vsub.s32 3, %v3225
    %v3227 = vrot.slane %v2170, %v3226
    %v3228 = vlaneseq
    %v3229 = vshrl.u32 %v3228, 7
    %v3230 = vsub.s32 4, %v3229
    %v3231 = vrot.slane %v2170, %v3230
    %3237 = vmatprep.subr.bf16.mxu0 %v2812
    %3238 = vmatpush1.bf16.msra.mxu0 %v2811
    %3239 = vmatprep.subr.bf16.mxu0 %v2817
    %3240 = vmatpush1.bf16.msra.mxu0 %v2816
    %3241 = vmatprep.subr.bf16.mxu0 %v2822
    %3242 = vmatpush1.bf16.msra.mxu0 %v2821
    %3243 = vmatprep.subr.bf16.mxu0 %v2827
    %3244 = vmatpush1.bf16.msra.mxu0 %v2826
    %3245 = vmatprep.subr.bf16.mxu0 %v2832
    %3246 = vmatpush1.bf16.msra.mxu0 %v2831
    %3247 = vmatprep.subr.bf16.mxu0 %v2837
    %3248 = vmatpush1.bf16.msra.mxu0 %v2836
    %3249 = vmatprep.subr.bf16.mxu0 %v2842
    %3250 = vmatpush1.bf16.msra.mxu0 %v2841
    %3251 = vmatprep.subr.bf16.mxu0 %v2847
    %3252 = vmatpush1.bf16.msra.mxu0 %v2846
    %3253 = vmatprep.subr.bf16.mxu0 %v2852
    %3254 = vmatpush1.bf16.msra.mxu0 %v2851
    %3255 = vmatprep.subr.bf16.mxu0 %v2857
    %3256 = vmatpush1.bf16.msra.mxu0 %v2856
    %3257 = vmatprep.subr.bf16.mxu0 %v2862
    %3258 = vmatpush1.bf16.msra.mxu0 %v2861
    %3259 = vmatprep.subr.bf16.mxu0 %v2867
    %3260 = vmatpush1.bf16.msra.mxu0 %v2866
    %3261 = vmatprep.subr.bf16.mxu0 %v2872
    %3262 = vmatpush1.bf16.msra.mxu0 %v2871
    %3263 = vmatprep.subr.bf16.mxu0 %v2877
    %3264 = vmatpush1.bf16.msra.mxu0 %v2876
    %3265 = vmatprep.subr.bf16.mxu0 %v2882
    %3266 = vmatpush1.bf16.msra.mxu0 %v2881
    %3267 = vmatprep.subr.bf16.mxu0 %v2887
    %3268 = vmatpush1.bf16.msra.mxu0 %v2886
    %3269 = vmatprep.mubr.bf16.mxu0 %v1926
    %3270 = vmatmul.mubr.bf16.gmra.mrb[0].mxu0 %v1925
    %v3271 = vpop.f32.mrb[0].mxu0
    %v3272 = vadd.f32 %v3215, %v3271
    %v3273 = vpop.f32.mrb[0].mxu0
    %v3274 = vadd.f32 %v3219, %v3273
    %v3275 = vpop.f32.mrb[0].mxu0
    %v3276 = vpop.f32.mrb[0].mxu0
    %3277 = vdwg.mxu0
    %3278 = vmatprep.subr.bf16.mxu0 %v2892
    %3279 = vmatpush1.bf16.msra.mxu0 %v2891
    %3280 = vmatprep.subr.bf16.mxu0 %v2897
    %3281 = vmatpush1.bf16.msra.mxu0 %v2896
    %3282 = vmatprep.subr.bf16.mxu0 %v2902
    %3283 = vmatpush1.bf16.msra.mxu0 %v2901
    %3284 = vmatprep.subr.bf16.mxu0 %v2907
    %3285 = vmatpush1.bf16.msra.mxu0 %v2906
    %3286 = vmatprep.subr.bf16.mxu0 %v2912
    %3287 = vmatpush1.bf16.msra.mxu0 %v2911
    %3288 = vmatprep.subr.bf16.mxu0 %v2917
    %3289 = vmatpush1.bf16.msra.mxu0 %v2916
    %3290 = vmatprep.subr.bf16.mxu0 %v2922
    %3291 = vmatpush1.bf16.msra.mxu0 %v2921
    %3292 = vmatprep.subr.bf16.mxu0 %v2927
    %3293 = vmatpush1.bf16.msra.mxu0 %v2926
    %3294 = vmatprep.subr.bf16.mxu0 %v2932
    %3295 = vmatpush1.bf16.msra.mxu0 %v2931
    %3296 = vmatprep.subr.bf16.mxu0 %v2937
    %3297 = vmatpush1.bf16.msra.mxu0 %v2936
    %3298 = vmatprep.subr.bf16.mxu0 %v2942
    %3299 = vmatpush1.bf16.msra.mxu0 %v2941
    %3300 = vmatprep.subr.bf16.mxu0 %v2947
    %3301 = vmatpush1.bf16.msra.mxu0 %v2946
    %3302 = vmatprep.subr.bf16.mxu0 %v2952
    %3303 = vmatpush1.bf16.msra.mxu0 %v2951
    %3304 = vmatprep.subr.bf16.mxu0 %v2957
    %3305 = vmatpush1.bf16.msra.mxu0 %v2956
    %3306 = vmatprep.subr.bf16.mxu0 %v2962
    %3307 = vmatpush1.bf16.msra.mxu0 %v2961
    %3308 = vmatprep.subr.bf16.mxu0 %v2967
    %3309 = vmatpush1.bf16.msra.mxu0 %v2966
    %3310 = vmatprep.mubr.bf16.mxu0 %v1928
    %3311 = vmatmul.mubr.bf16.gmra.mrb[0].mxu0 %v1927
    %v3312 = vpop.f32.mrb[0].mxu0
    %v3313 = vadd.f32 %v3272, %v3312
    %v3314 = vpop.f32.mrb[0].mxu0
    %v3315 = vadd.f32 %v3274, %v3314
    %v3316 = vpop.f32.mrb[0].mxu0
    %v3317 = vpop.f32.mrb[0].mxu0
    %3318 = vdwg.mxu0
    %3319 = vmatprep.subr.bf16.mxu0 %v2972
    %3320 = vmatpush1.bf16.msra.mxu0 %v2971
    %3321 = vmatprep.subr.bf16.mxu0 %v2977
    %3322 = vmatpush1.bf16.msra.mxu0 %v2976
    %3323 = vmatprep.subr.bf16.mxu0 %v2982
    %3324 = vmatpush1.bf16.msra.mxu0 %v2981
    %3325 = vmatprep.subr.bf16.mxu0 %v2987
    %3326 = vmatpush1.bf16.msra.mxu0 %v2986
    %3327 = vmatprep.subr.bf16.mxu0 %v2992
    %3328 = vmatpush1.bf16.msra.mxu0 %v2991
    %3329 = vmatprep.subr.bf16.mxu0 %v2997
    %3330 = vmatpush1.bf16.msra.mxu0 %v2996
    %3331 = vmatprep.subr.bf16.mxu0 %v3002
    %3332 = vmatpush1.bf16.msra.mxu0 %v3001
    %3333 = vmatprep.subr.bf16.mxu0 %v3007
    %3334 = vmatpush1.bf16.msra.mxu0 %v3006
    %3335 = vmatprep.subr.bf16.mxu0 0
    %3336 = vmatpush1.bf16.msra.mxu0 0
    %3337 = vmatprep.subr.bf16.mxu0 0
    %3338 = vmatpush1.bf16.msra.mxu0 0
    %3339 = vmatprep.subr.bf16.mxu0 0
    %3340 = vmatpush1.bf16.msra.mxu0 0
    %3341 = vmatprep.subr.bf16.mxu0 0
    %3342 = vmatpush1.bf16.msra.mxu0 0
    %3343 = vmatprep.subr.bf16.mxu0 0
    %3344 = vmatpush1.bf16.msra.mxu0 0
    %3345 = vmatprep.subr.bf16.mxu0 0
    %3346 = vmatpush1.bf16.msra.mxu0 0
    %3347 = vmatprep.subr.bf16.mxu0 0
    %3348 = vmatpush1.bf16.msra.mxu0 0
    %3349 = vmatprep.subr.bf16.mxu0 0
    %3350 = vmatpush1.bf16.msra.mxu0 0
    %3351 = vmatprep.mubr.bf16.mxu0 0
    %3352 = vmatmul.mubr.bf16.gmra.mrb[0].mxu0 %v1929
    %v3353 = vpop.f32.mrb[0].mxu0
    %v3354 = vadd.f32 %v3313, %v3353
    %v3355 = vpop.f32.mrb[0].mxu0
    %v3356 = vadd.f32 %v3315, %v3355
    %v3357 = vpop.f32.mrb[0].mxu0
    %v3358 = vpop.f32.mrb[0].mxu0
    %3359 = vdwg.mxu0
    %3360 = vmatprep.subr.bf16.mxu0 %v2814
    %3361 = vmatpush1.bf16.msra.mxu0 %v2813
    %3362 = vmatprep.subr.bf16.mxu0 %v2819
    %3363 = vmatpush1.bf16.msra.mxu0 %v2818
    %3364 = vmatprep.subr.bf16.mxu0 %v2824
    %3365 = vmatpush1.bf16.msra.mxu0 %v2823
    %3366 = vmatprep.subr.bf16.mxu0 %v2829
    %3367 = vmatpush1.bf16.msra.mxu0 %v2828
    %3368 = vmatprep.subr.bf16.mxu0 %v2834
    %3369 = vmatpush1.bf16.msra.mxu0 %v2833
    %3370 = vmatprep.subr.bf16.mxu0 %v2839
    %3371 = vmatpush1.bf16.msra.mxu0 %v2838
    %3372 = vmatprep.subr.bf16.mxu0 %v2844
    %3373 = vmatpush1.bf16.msra.mxu0 %v2843
    %3374 = vmatprep.subr.bf16.mxu0 %v2849
    %3375 = vmatpush1.bf16.msra.mxu0 %v2848
    %3376 = vmatprep.subr.bf16.mxu0 %v2854
    %3377 = vmatpush1.bf16.msra.mxu0 %v2853
    %3378 = vmatprep.subr.bf16.mxu0 %v2859
    %3379 = vmatpush1.bf16.msra.mxu0 %v2858
    %3380 = vmatprep.subr.bf16.mxu0 %v2864
    %3381 = vmatpush1.bf16.msra.mxu0 %v2863
    %3382 = vmatprep.subr.bf16.mxu0 %v2869
    %3383 = vmatpush1.bf16.msra.mxu0 %v2868
    %3384 = vmatprep.subr.bf16.mxu0 %v2874
    %3385 = vmatpush1.bf16.msra.mxu0 %v2873
    %3386 = vmatprep.subr.bf16.mxu0 %v2879
    %3387 = vmatpush1.bf16.msra.mxu0 %v2878
    %3388 = vmatprep.subr.bf16.mxu0 %v2884
    %3389 = vmatpush1.bf16.msra.mxu0 %v2883
    %3390 = vmatprep.subr.bf16.mxu0 %v2889
    %3391 = vmatpush1.bf16.msra.mxu0 %v2888
    %3392 = vmatprep.mubr.bf16.mxu0 %v1926
    %3393 = vmatmul.mubr.bf16.gmra.mrb[0].mxu0 %v1925
    %v3394 = vpop.f32.mrb[0].mxu0
    %v3395 = vadd.f32 %v3223, %v3394
    %v3396 = vpop.f32.mrb[0].mxu0
    %v3397 = vadd.f32 %v3227, %v3396
    %v3398 = vpop.f32.mrb[0].mxu0
    %v3399 = vpop.f32.mrb[0].mxu0
    %3400 = vdwg.mxu0
    %3401 = vmatprep.subr.bf16.mxu0 %v2894
    %3402 = vmatpush1.bf16.msra.mxu0 %v2893
    %3403 = vmatprep.subr.bf16.mxu0 %v2899
    %3404 = vmatpush1.bf16.msra.mxu0 %v2898
    %3405 = vmatprep.subr.bf16.mxu0 %v2904
    %3406 = vmatpush1.bf16.msra.mxu0 %v2903
    %3407 = vmatprep.subr.bf16.mxu0 %v2909
    %3408 = vmatpush1.bf16.msra.mxu0 %v2908
    %3409 = vmatprep.subr.bf16.mxu0 %v2914
    %3410 = vmatpush1.bf16.msra.mxu0 %v2913
    %3411 = vmatprep.subr.bf16.mxu0 %v2919
    %3412 = vmatpush1.bf16.msra.mxu0 %v2918
    %3413 = vmatprep.subr.bf16.mxu0 %v2924
    %3414 = vmatpush1.bf16.msra.mxu0 %v2923
    %3415 = vmatprep.subr.bf16.mxu0 %v2929
    %3416 = vmatpush1.bf16.msra.mxu0 %v2928
    %3417 = vmatprep.subr.bf16.mxu0 %v2934
    %3418 = vmatpush1.bf16.msra.mxu0 %v2933
    %3419 = vmatprep.subr.bf16.mxu0 %v2939
    %3420 = vmatpush1.bf16.msra.mxu0 %v2938
    %3421 = vmatprep.subr.bf16.mxu0 %v2944
    %3422 = vmatpush1.bf16.msra.mxu0 %v2943
    %3423 = vmatprep.subr.bf16.mxu0 %v2949
    %3424 = vmatpush1.bf16.msra.mxu0 %v2948
    %3425 = vmatprep.subr.bf16.mxu0 %v2954
    %3426 = vmatpush1.bf16.msra.mxu0 %v2953
    %3427 = vmatprep.subr.bf16.mxu0 %v2959
    %3428 = vmatpush1.bf16.msra.mxu0 %v2958
    %3429 = vmatprep.subr.bf16.mxu0 %v2964
    %3430 = vmatpush1.bf16.msra.mxu0 %v2963
    %3431 = vmatprep.subr.bf16.mxu0 %v2969
    %3432 = vmatpush1.bf16.msra.mxu0 %v2968
    %3433 = vmatprep.mubr.bf16.mxu0 %v1928
    %3434 = vmatmul.mubr.bf16.gmra.mrb[0].mxu0 %v1927
    %v3435 = vpop.f32.mrb[0].mxu0
    %v3436 = vadd.f32 %v3395, %v3435
    %v3437 = vpop.f32.mrb[0].mxu0
    %v3438 = vadd.f32 %v3397, %v3437
    %v3439 = vpop.f32.mrb[0].mxu0
    %v3440 = vpop.f32.mrb[0].mxu0
    %3441 = vdwg.mxu0
    %3442 = vmatprep.subr.bf16.mxu0 %v2974
    %3443 = vmatpush1.bf16.msra.mxu0 %v2973
    %3444 = vmatprep.subr.bf16.mxu0 %v2979
    %3445 = vmatpush1.bf16.msra.mxu0 %v2978
    %3446 = vmatprep.subr.bf16.mxu0 %v2984
    %3447 = vmatpush1.bf16.msra.mxu0 %v2983
    %3448 = vmatprep.subr.bf16.mxu0 %v2989
    %3449 = vmatpush1.bf16.msra.mxu0 %v2988
    %3450 = vmatprep.subr.bf16.mxu0 %v2994
    %3451 = vmatpush1.bf16.msra.mxu0 %v2993
    %3452 = vmatprep.subr.bf16.mxu0 %v2999
    %3453 = vmatpush1.bf16.msra.mxu0 %v2998
    %3454 = vmatprep.subr.bf16.mxu0 %v3004
    %3455 = vmatpush1.bf16.msra.mxu0 %v3003
    %3456 = vmatprep.subr.bf16.mxu0 %v3009
    %3457 = vmatpush1.bf16.msra.mxu0 %v3008
    %3458 = vmatprep.subr.bf16.mxu0 0
    %3459 = vmatpush1.bf16.msra.mxu0 0
    %3460 = vmatprep.subr.bf16.mxu0 0
    %3461 = vmatpush1.bf16.msra.mxu0 0
    %3462 = vmatprep.subr.bf16.mxu0 0
    %3463 = vmatpush1.bf16.msra.mxu0 0
    %3464 = vmatprep.subr.bf16.mxu0 0
    %3465 = vmatpush1.bf16.msra.mxu0 0
    %3466 = vmatprep.subr.bf16.mxu0 0
    %3467 = vmatpush1.bf16.msra.mxu0 0
    %3468 = vmatprep.subr.bf16.mxu0 0
    %3469 = vmatpush1.bf16.msra.mxu0 0
    %3470 = vmatprep.subr.bf16.mxu0 0
    %3471 = vmatpush1.bf16.msra.mxu0 0
    %3472 = vmatprep.subr.bf16.mxu0 0
    %3473 = vmatpush1.bf16.msra.mxu0 0
    %3474 = vmatprep.mubr.bf16.mxu0 0
    %3475 = vmatmul.mubr.bf16.gmra.mrb[0].mxu0 %v1929
    %v3476 = vpop.f32.mrb[0].mxu0
    %v3477 = vadd.f32 %v3436, %v3476
    %v3478 = vpop.f32.mrb[0].mxu0
    %v3479 = vadd.f32 %v3438, %v3478
    %v3480 = vpop.f32.mrb[0].mxu0
    %v3481 = vpop.f32.mrb[0].mxu0
    %3482 = vdwg.mxu0
    %3483 = vmatprep.subr.bf16.mxu0 0
    %3484 = vmatpush1.bf16.msra.mxu0 %v2815
    %3485 = vmatprep.subr.bf16.mxu0 0
    %3486 = vmatpush1.bf16.msra.mxu0 %v2820
    %3487 = vmatprep.subr.bf16.mxu0 0
    %3488 = vmatpush1.bf16.msra.mxu0 %v2825
    %3489 = vmatprep.subr.bf16.mxu0 0
    %3490 = vmatpush1.bf16.msra.mxu0 %v2830
    %3491 = vmatprep.subr.bf16.mxu0 0
    %3492 = vmatpush1.bf16.msra.mxu0 %v2835
    %3493 = vmatprep.subr.bf16.mxu0 0
    %3494 = vmatpush1.bf16.msra.mxu0 %v2840
    %3495 = vmatprep.subr.bf16.mxu0 0
    %3496 = vmatpush1.bf16.msra.mxu0 %v2845
    %3497 = vmatprep.subr.bf16.mxu0 0
    %3498 = vmatpush1.bf16.msra.mxu0 %v2850
    %3499 = vmatprep.subr.bf16.mxu0 0
    %3500 = vmatpush1.bf16.msra.mxu0 %v2855
    %3501 = vmatprep.subr.bf16.mxu0 0
    %3502 = vmatpush1.bf16.msra.mxu0 %v2860
    %3503 = vmatprep.subr.bf16.mxu0 0
    %3504 = vmatpush1.bf16.msra.mxu0 %v2865
    %3505 = vmatprep.subr.bf16.mxu0 0
    %3506 = vmatpush1.bf16.msra.mxu0 %v2870
    %3507 = vmatprep.subr.bf16.mxu0 0
    %3508 = vmatpush1.bf16.msra.mxu0 %v2875
    %3509 = vmatprep.subr.bf16.mxu0 0
    %3510 = vmatpush1.bf16.msra.mxu0 %v2880
    %3511 = vmatprep.subr.bf16.mxu0 0
    %3512 = vmatpush1.bf16.msra.mxu0 %v2885
    %3513 = vmatprep.subr.bf16.mxu0 0
    %3514 = vmatpush1.bf16.msra.mxu0 %v2890
    %3515 = vmatprep.mubr.bf16.mxu0 %v1926
    %3516 = vmatmul.mubr.bf16.gmra.mrb[0].mxu0 %v1925
    %v3517 = vpop.f32.mrb[0].mxu0
    %v3518 = vadd.f32 %v3231, %v3517
    %v3519 = vpop.f32.mrb[0].mxu0
    %v3520 = vpop.f32.mrb[0].mxu0
    %v3521 = vpop.f32.mrb[0].mxu0
    %3522 = vdwg.mxu0
    %3523 = vmatprep.subr.bf16.mxu0 0
    %3524 = vmatpush1.bf16.msra.mxu0 %v2895
    %3525 = vmatprep.subr.bf16.mxu0 0
    %3526 = vmatpush1.bf16.msra.mxu0 %v2900
    %3527 = vmatprep.subr.bf16.mxu0 0
    %3528 = vmatpush1.bf16.msra.mxu0 %v2905
    %3529 = vmatprep.subr.bf16.mxu0 0
    %3530 = vmatpush1.bf16.msra.mxu0 %v2910
    %3531 = vmatprep.subr.bf16.mxu0 0
    %3532 = vmatpush1.bf16.msra.mxu0 %v2915
    %3533 = vmatprep.subr.bf16.mxu0 0
    %3534 = vmatpush1.bf16.msra.mxu0 %v2920
    %3535 = vmatprep.subr.bf16.mxu0 0
    %3536 = vmatpush1.bf16.msra.mxu0 %v2925
    %3537 = vmatprep.subr.bf16.mxu0 0
    %3538 = vmatpush1.bf16.msra.mxu0 %v2930
    %3539 = vmatprep.subr.bf16.mxu0 0
    %3540 = vmatpush1.bf16.msra.mxu0 %v2935
    %3541 = vmatprep.subr.bf16.mxu0 0
    %3542 = vmatpush1.bf16.msra.mxu0 %v2940
    %3543 = vmatprep.subr.bf16.mxu0 0
    %3544 = vmatpush1.bf16.msra.mxu0 %v2945
    %3545 = vmatprep.subr.bf16.mxu0 0
    %3546 = vmatpush1.bf16.msra.mxu0 %v2950
    %3547 = vmatprep.subr.bf16.mxu0 0
    %3548 = vmatpush1.bf16.msra.mxu0 %v2955
    %3549 = vmatprep.subr.bf16.mxu0 0
    %3550 = vmatpush1.bf16.msra.mxu0 %v2960
    %3551 = vmatprep.subr.bf16.mxu0 0
    %3552 = vmatpush1.bf16.msra.mxu0 %v2965
    %3553 = vmatprep.subr.bf16.mxu0 0
    %3554 = vmatpush1.bf16.msra.mxu0 %v2970
    %3555 = vmatprep.mubr.bf16.mxu0 %v1928
    %3556 = vmatmul.mubr.bf16.gmra.mrb[0].mxu0 %v1927
    %v3557 = vpop.f32.mrb[0].mxu0
    %v3558 = vadd.f32 %v3518, %v3557
    %v3559 = vpop.f32.mrb[0].mxu0
    %v3560 = vpop.f32.mrb[0].mxu0
    %v3561 = vpop.f32.mrb[0].mxu0
    %3562 = vdwg.mxu0
    %3563 = vmatprep.subr.bf16.mxu0 0
    %3564 = vmatpush1.bf16.msra.mxu0 %v2975
    %3565 = vmatprep.subr.bf16.mxu0 0
    %3566 = vmatpush1.bf16.msra.mxu0 %v2980
    %3567 = vmatprep.subr.bf16.mxu0 0
    %3568 = vmatpush1.bf16.msra.mxu0 %v2985
    %3569 = vmatprep.subr.bf16.mxu0 0
    %3570 = vmatpush1.bf16.msra.mxu0 %v2990
    %3571 = vmatprep.subr.bf16.mxu0 0
    %3572 = vmatpush1.bf16.msra.mxu0 %v2995
    %3573 = vmatprep.subr.bf16.mxu0 0
    %3574 = vmatpush1.bf16.msra.mxu0 %v3000
    %3575 = vmatprep.subr.bf16.mxu0 0
    %3576 = vmatpush1.bf16.msra.mxu0 %v3005
    %3577 = vmatprep.subr.bf16.mxu0 0
    %3578 = vmatpush1.bf16.msra.mxu0 %v3010
    %3579 = vmatprep.subr.bf16.mxu0 0
    %3580 = vmatpush1.bf16.msra.mxu0 0
    %3581 = vmatprep.subr.bf16.mxu0 0
    %3582 = vmatpush1.bf16.msra.mxu0 0
    %3583 = vmatprep.subr.bf16.mxu0 0
    %3584 = vmatpush1.bf16.msra.mxu0 0
    %3585 = vmatprep.subr.bf16.mxu0 0
    %3586 = vmatpush1.bf16.msra.mxu0 0
    %3587 = vmatprep.subr.bf16.mxu0 0
    %3588 = vmatpush1.bf16.msra.mxu0 0
    %3589 = vmatprep.subr.bf16.mxu0 0
    %3590 = vmatpush1.bf16.msra.mxu0 0
    %3591 = vmatprep.subr.bf16.mxu0 0
    %3592 = vmatpush1.bf16.msra.mxu0 0
    %3593 = vmatprep.subr.bf16.mxu0 0
    %3594 = vmatpush1.bf16.msra.mxu0 0
    %3595 = vmatprep.mubr.bf16.mxu0 0
    %3596 = vmatmul.mubr.bf16.gmra.mrb[0].mxu0 %v1929
    %v3597 = vpop.f32.mrb[0].mxu0
    %v3598 = vadd.f32 %v3558, %v3597
    %v3599 = vpop.f32.mrb[0].mxu0
    %v3600 = vpop.f32.mrb[0].mxu0
    %v3601 = vpop.f32.mrb[0].mxu0
    %3602 = vdwg.mxu0
    %v3608 = vcombine.low %v3354, %v3356
    %v3609 = vcombine.low %v3477, %v3479
    %v3611 = vunpack.c.l.s4 1966171168
    %v3612 = vunpack.c.0.s8 %v3611
    %v3613 = vlaneseq
    %v3614 = vshrl.u32 %v3613, 7
    %v3615 = vsub.s32 %v3612, %v3614
    %v3616 = vrot.slane %v3608, %v3615
    %v3618 = vunpack.c.l.s4 1966171168
    %v3619 = vunpack.c.0.s8 %v3618
    %v3620 = vlaneseq
    %v3621 = vshrl.u32 %v3620, 7
    %v3622 = vsub.s32 %v3619, %v3621
    %v3623 = vrot.slane %v3609, %v3622
    %v3625 = vunpack.c.l.s4 1966171168
    %v3626 = vunpack.c.0.s8 %v3625
    %v3627 = vlaneseq
    %v3628 = vshrl.u32 %v3627, 7
    %v3629 = vsub.s32 %v3626, %v3628
    %v3630 = vrot.slane %v3598, %v3629
    %v3631 = vcombine.low %v3616, %v3623
    %v3633 = vunpack.c.l.s4 1966171168
    %v3634 = vunpack.c.0.s8 %v3633
    %v3635 = vlaneseq
    %v3636 = vshrl.u32 %v3635, 7
    %v3637 = vsub.s32 %v3634, %v3636
    %v3638 = vrot.slane %v3631, %v3637
    %v3640 = vunpack.c.l.s4 1966171168
    %v3641 = vunpack.c.0.s8 %v3640
    %v3642 = vlaneseq
    %v3643 = vshrl.u32 %v3642, 7
    %v3644 = vsub.s32 %v3641, %v3643
    %v3645 = vrot.slane %v3630, %v3644
    %v3646 = vcombine.low %v3638, %v3645
    %v3648 = vlaneseq
    %vm3649 = vcmp.ge.s32.totalorder %v3648, 0
    %vm3650 = vcmp.lt.s32.totalorder %v3648, 640
    %vm3651 = vmand %vm3649, %vm3650
    %3652 = vst.msk [vmem:[#allocation8] sm:$0x1f] %vm3651, %v3646
    // Predicated region
    $region34: #{tpu_custom_call.1} parent=1 // pred_check
      _
    $region35: #{tpu_custom_call.1} parent=1 // pred_check_branch
      %3654 = sbr.rel (0) target = $region37
    $region36: #{tpu_custom_call.1} parent=1 // pred_region
      %s3656 = ssub.s32 80, 80
      %3657 = vsyncadd [#allocation4], %s3656
      %s3659 = sshll.u32 [#allocation8], 4
      %s3660 = int_to_ptr.vmem [resolvable:$true] %s3659
      %3662 = dma.vmem_to_hbm [thread:$0]  %s3660, 80, %s5, [#allocation4]
    $region37: #{tpu_custom_call.1} parent=1 // pred_fallthru
      _
    // Predicated region
    $region38: #{tpu_custom_call.1} parent=1 // pred_check
      _
    $region39: #{tpu_custom_call.1} parent=1 // pred_check_branch
      %3664 = sbr.rel (0) target = $region41
    $region40: #{tpu_custom_call.1} parent=1 // pred_region
      %3665 = dma.done [#allocation4], 80
    $region41: #{tpu_custom_call.1} parent=1 // pred_fallthru
      _
    %3666 = vsyncpa [#allocation3], 1
    %3667 = vsyncpa [#allocation6], 1
    %3668 = vsyncpa [#allocation4], 1

</llo_original>
